<compile_context>
chip_gen: v7x
topology: tpu7x:2x2x1
jax: 0.10.0
libtpu: 0.0.40
codegen_flags: <defaults>
</compile_context>

<pallas_src>
import math

import jax
import jax.numpy as jnp
import numpy as np
from jax.experimental import pallas as pl
from jax.experimental.pallas import tpu as pltpu


def _fpu_kernel(x_ref, wa_ref, wb_ref, idft_ref, out_ref):
    """Whole FPU forward for one batch element.

    x_ref    : (1, C, S)         input, spatial flattened onto lanes (f32)
    wa_ref   : (2*C2, 2*C + 1)   blockdiag(w1, w3) with bias column (bf16)
    wb_ref   : (2*C, 2*C2 + 1)   blockdiag(w2, w4) with bias column (bf16)
    idft_ref : (2*S, S)          stacked [Mr; Mi] irfft2 basis (f32)
    out_ref  : (1, C, S)         |irfft2(real + i*imag)| + eps (f32)
    """
    C = x_ref.shape[1]
    S = x_ref.shape[2]

    # FreBlock (f32 elementwise; real input -> angle is exactly {0, pi}).
    x = x_ref[0] + 1e-8
    mag = jnp.abs(x)
    pha = jnp.where(x >= 0, jnp.zeros_like(x), jnp.full_like(x, math.pi))
    ones = jnp.ones((1, S), jnp.float32)

    # Layer 1 of both branches as ONE MXU matmul (bias folded via ones row).
    act1 = jnp.concatenate([mag, pha, ones], axis=0).astype(wa_ref.dtype)
    h = jnp.dot(wa_ref[...], act1, preferred_element_type=jnp.float32)

    # tanh in f32 (EUP), then layer 2 of both branches as one matmul.
    act2 = jnp.concatenate([jnp.tanh(h), ones], axis=0).astype(wb_ref.dtype)
    o = jnp.dot(wb_ref[...], act2, preferred_element_type=jnp.float32)

    mag_o = o[:C]                               # (C, S)
    pha_o = o[C:]                               # (C, S)

    # Complex spectrum components laid out as [real | imag] along lanes.
    spec = jnp.concatenate(
        [mag_o * jnp.cos(pha_o), mag_o * jnp.sin(pha_o)], axis=1)   # (C, 2S)

    # Fused irfft2: one (C, 2S) @ (2S, S) matmul in f32, then |.| + eps.
    y = jnp.dot(spec, idft_ref[...], preferred_element_type=jnp.float32)
    out_ref[0] = (jnp.abs(y) + 1e-8).astype(out_ref.dtype)


def _pack_conv_weights(params, dtype=jnp.bfloat16):
    """Block-diagonal [mag-branch ; pha-branch] weights with folded biases."""
    w1, b1 = params["w1"], params["b1"]      # (C2, C), (C2,)
    w2, b2 = params["w2"], params["b2"]      # (C, C2), (C,)
    w3, b3 = params["w3"], params["b3"]
    w4, b4 = params["w4"], params["b4"]
    C2, C = w1.shape

    za = jnp.zeros((C2, C), jnp.float32)
    wa = jnp.concatenate(
        [jnp.concatenate([w1, za, b1[:, None]], axis=1),
         jnp.concatenate([za, w3, b3[:, None]], axis=1)], axis=0)  # (2C2, 2C+1)

    zb = jnp.zeros((C, C2), jnp.float32)
    wb = jnp.concatenate(
        [jnp.concatenate([w2, zb, b2[:, None]], axis=1),
         jnp.concatenate([zb, w4, b4[:, None]], axis=1)], axis=0)  # (2C, 2C2+1)

    return wa.astype(dtype), wb.astype(dtype)


def _irfft2_basis(H, W):
    """(2*S, S) matrix M with flat([real | imag]) @ M == flat(irfft2(real + i*imag)).

    Built by pushing one-hot spectra through jnp.fft.irfft2, so the crop to
    W//2+1 columns, DC/Nyquist-bin handling and the 'backward' norm all match
    the library transform exactly (irfft2 is linear in its input).
    """
    S = H * W
    eye = jnp.eye(S, dtype=jnp.float32).reshape(S, H, W)
    zero = jnp.zeros_like(eye)
    mr = jnp.fft.irfft2(jax.lax.complex(eye, zero), s=(H, W), norm="backward")
    mi = jnp.fft.irfft2(jax.lax.complex(zero, eye), s=(H, W), norm="backward")
    return jnp.concatenate([mr.reshape(S, S), mi.reshape(S, S)], axis=0)


def fpu_forward(x, params):
    """Pallas implementation of FPU.forward (NCHW, real input)."""
    N, C, H, W = x.shape
    S = H * W
    C2 = params["w1"].shape[0]          # 2 * n_feats

    # Lane-dense layout: flatten spatial dims onto lanes (metadata-only view).
    x_flat = x.reshape(N, C, S).astype(jnp.float32)
    wa, wb = _pack_conv_weights(params)          # bf16 MXU operands
    idft = _irfft2_basis(H, W)                   # f32 (2S, S)

    out = pl.pallas_call(
        _fpu_kernel,
        out_shape=jax.ShapeDtypeStruct((N, C, S), jnp.float32),
        grid_spec=pltpu.PrefetchScalarGridSpec(
            num_scalar_prefetch=0,
            grid=(N,),
            in_specs=[
                pl.BlockSpec((1, C, S), lambda n: (n, 0, 0)),
                pl.BlockSpec((2 * C2, 2 * C + 1), lambda n: (0, 0)),
                pl.BlockSpec((2 * C, 2 * C2 + 1), lambda n: (0, 0)),
                pl.BlockSpec((2 * S, S), lambda n: (0, 0)),
            ],
            out_specs=pl.BlockSpec((1, C, S), lambda n: (n, 0, 0)),
        ),
        compiler_params=pltpu.CompilerParams(
            dimension_semantics=("parallel",)),
    )(x_flat, wa, wb, idft)

    return out.reshape(N, C, H, W).astype(x.dtype)


def init_params(key, n_feats, dtype=jnp.float32):
    """PyTorch Conv2d-style uniform init for the four 1x1 conv layers."""
    C, C2 = n_feats, 2 * n_feats
    ks = jax.random.split(key, 8)

    def u(k, shape, fan_in):
        bound = 1.0 / math.sqrt(fan_in)
        return jax.random.uniform(k, shape, dtype, -bound, bound)

    return {
        # Conv1:   Conv2d(C, 2C, 1) -> tanh -> Conv2d(2C, C, 1)
        "w1": u(ks[0], (C2, C), C), "b1": u(ks[1], (C2,), C),
        "w2": u(ks[2], (C, C2), C2), "b2": u(ks[3], (C,), C2),
        # Conv1_1: Conv2d(C, 2C, 1) -> tanh -> Conv2d(2C, C, 1)
        "w3": u(ks[4], (C2, C), C), "b3": u(ks[5], (C2,), C),
        "w4": u(ks[6], (C, C2), C2), "b4": u(ks[7], (C,), C2),
    }


def ref_forward(x, params):
    """Pure-JAX f32 reference mirroring the PyTorch forward."""
    N, C, H, W = x.shape
    xe = x + 1e-8
    mag = jnp.abs(xe)
    pha = jnp.angle(xe)                       # real input -> {0, pi}
    hp = jax.lax.Precision.HIGHEST

    def mlp(v, w_a, b_a, w_b, b_b):
        h = jnp.einsum("oi,nihw->nohw", w_a, v, precision=hp)
        h = jnp.tanh(h + b_a[None, :, None, None])
        h = jnp.einsum("oi,nihw->nohw", w_b, h, precision=hp)
        return h + b_b[None, :, None, None]

    mag_o = mlp(mag, params["w1"], params["b1"], params["w2"], params["b2"])
    pha_o = mlp(pha, params["w3"], params["b3"], params["w4"], params["b4"])
    real = mag_o * jnp.cos(pha_o)
    imag = mag_o * jnp.sin(pha_o)
    x_c = jax.lax.complex(real, imag)
    return jnp.abs(jnp.fft.irfft2(x_c, s=(H, W), norm="backward")) + 1e-8


if __name__ == "__main__":
    key = jax.random.PRNGKey(0)
    kx, kp = jax.random.split(key)

    N, C, H, W = 2, 16, 16, 16              # n_feats = 16 (module default)
    x = jax.random.normal(kx, (N, C, H, W), dtype=jnp.float32)
    params = init_params(kp, C)

    out = jax.block_until_ready(jax.jit(fpu_forward)(x, params))
    ref = jax.block_until_ready(ref_forward(x, params))

    assert out.shape == (N, C, H, W)
    # Tolerance reflects bf16 MXU operands in the fused conv matmuls
    # (reference runs the whole stack in f32).
    np.testing.assert_allclose(np.asarray(out), np.asarray(ref),
                               atol=5e-3, rtol=5e-3)
    print("KERNEL_OK")
</pallas_src>

<mosaic_0001>
module attributes {stable_mosaic.version = 11 : i64} {
  func.func @_fpu_kernel(%arg0: i32, %arg1: memref<1x16x256xf32, #tpu.memory_space<vmem>>, %arg2: memref<64x33xbf16, #tpu.memory_space<vmem>>, %arg3: memref<32x65xbf16, #tpu.memory_space<vmem>>, %arg4: memref<512x256xf32, #tpu.memory_space<vmem>>, %arg5: memref<1x16x256xf32, #tpu.memory_space<vmem>>) attributes {dimension_semantics = [#tpu.dimension_semantics<parallel>], iteration_bounds = array<i64: 2>, scalar_prefetch = 0 : i64, scratch_operands = 0 : i64, tpu.core_type = #tpu.core_type<tc>, window_params = [{transform_indices = @transform_0, window_bounds = array<i64: 1, 16, 256>}, {pipeline_mode = #tpu.pipeline_mode<synchronous>, transform_indices = @transform_1, window_bounds = array<i64: 64, 33>}, {pipeline_mode = #tpu.pipeline_mode<synchronous>, transform_indices = @transform_2, window_bounds = array<i64: 32, 65>}, {pipeline_mode = #tpu.pipeline_mode<synchronous>, transform_indices = @transform_3, window_bounds = array<i64: 512, 256>}, {transform_indices = @transform_4, window_bounds = array<i64: 1, 16, 256>}]} {
    %c0 = arith.constant 0 : index
    %c0_0 = arith.constant 0 : index
    %c0_1 = arith.constant 0 : index
    %0 = vector.load %arg1[%c0, %c0_0, %c0_1] : memref<1x16x256xf32, #tpu.memory_space<vmem>>, vector<1x16x256xf32>
    %1 = vector.shape_cast %0 : vector<1x16x256xf32> to vector<16x256xf32>
    %cst = arith.constant 9.99999993E-9 : f32
    %2 = vector.broadcast %cst : f32 to vector<16x256xf32>
    %3 = arith.addf %1, %2 : vector<16x256xf32>
    %4 = math.absf %3 : vector<16x256xf32>
    %cst_2 = arith.constant 0.000000e+00 : f32
    %5 = vector.broadcast %cst_2 : f32 to vector<16x256xf32>
    %6 = arith.cmpf oge, %3, %5 : vector<16x256xf32>
    %cst_3 = arith.constant 0.000000e+00 : f32
    %7 = vector.broadcast %cst_3 : f32 to vector<16x256xf32>
    %cst_4 = arith.constant 3.14159274 : f32
    %8 = vector.broadcast %cst_4 : f32 to vector<16x256xf32>
    %9 = arith.select %6, %7, %8 : vector<16x256xi1>, vector<16x256xf32>
    %cst_5 = arith.constant 1.000000e+00 : f32
    %10 = vector.broadcast %cst_5 : f32 to vector<1x256xf32>
    %11 = tpu.concatenate %4, %9, %10 in 0 : vector<16x256xf32>, vector<16x256xf32>, vector<1x256xf32> -> vector<33x256xf32>
    %12 = arith.truncf %11 : vector<33x256xf32> to vector<33x256xbf16>
    %c0_6 = arith.constant 0 : index
    %c0_7 = arith.constant 0 : index
    %13 = vector.load %arg2[%c0_6, %c0_7] : memref<64x33xbf16, #tpu.memory_space<vmem>>, vector<64x33xbf16>
    %cst_8 = arith.constant dense<0.000000e+00> : vector<64x256xf32>
    %14 = tpu.matmul %13, %12, %cst_8 {dimension_numbers = #tpu.dot_dimension_numbers<[1], [0], [0], [1], [0, 0, 1, 1], [], []>} : vector<64x33xbf16>, vector<33x256xbf16>, vector<64x256xf32> -> vector<64x256xf32>
    %15 = math.tanh %14 : vector<64x256xf32>
    %16 = tpu.concatenate %15, %10 in 0 : vector<64x256xf32>, vector<1x256xf32> -> vector<65x256xf32>
    %17 = arith.truncf %16 : vector<65x256xf32> to vector<65x256xbf16>
    %c0_9 = arith.constant 0 : index
    %c0_10 = arith.constant 0 : index
    %18 = vector.load %arg3[%c0_9, %c0_10] : memref<32x65xbf16, #tpu.memory_space<vmem>>, vector<32x65xbf16>
    %cst_11 = arith.constant dense<0.000000e+00> : vector<32x256xf32>
    %19 = tpu.matmul %18, %17, %cst_11 {dimension_numbers = #tpu.dot_dimension_numbers<[1], [0], [0], [1], [0, 0, 1, 1], [], []>} : vector<32x65xbf16>, vector<65x256xbf16>, vector<32x256xf32> -> vector<32x256xf32>
    %20 = vector.extract_strided_slice %19 {offsets = [0, 0], sizes = [16, 256], strides = [1, 1]} : vector<32x256xf32> to vector<16x256xf32>
    %21 = vector.extract_strided_slice %19 {offsets = [16, 0], sizes = [16, 256], strides = [1, 1]} : vector<32x256xf32> to vector<16x256xf32>
    %22 = math.cos %21 : vector<16x256xf32>
    %23 = arith.mulf %20, %22 : vector<16x256xf32>
    %24 = math.sin %21 : vector<16x256xf32>
    %25 = arith.mulf %20, %24 : vector<16x256xf32>
    %26 = tpu.concatenate %23, %25 in 1 : vector<16x256xf32>, vector<16x256xf32> -> vector<16x512xf32>
    %c0_12 = arith.constant 0 : index
    %c0_13 = arith.constant 0 : index
    %27 = vector.load %arg4[%c0_12, %c0_13] : memref<512x256xf32, #tpu.memory_space<vmem>>, vector<512x256xf32>
    %cst_14 = arith.constant dense<0.000000e+00> : vector<16x256xf32>
    %28 = tpu.matmul %26, %27, %cst_14 {dimension_numbers = #tpu.dot_dimension_numbers<[1], [0], [0], [1], [0, 0, 1, 1], [], []>} : vector<16x512xf32>, vector<512x256xf32>, vector<16x256xf32> -> vector<16x256xf32>
    %29 = math.absf %28 : vector<16x256xf32>
    %cst_15 = arith.constant 9.99999993E-9 : f32
    %30 = vector.broadcast %cst_15 : f32 to vector<16x256xf32>
    %31 = arith.addf %29, %30 : vector<16x256xf32>
    %c0_16 = arith.constant 0 : index
    %c0_17 = arith.constant 0 : index
    %c0_18 = arith.constant 0 : index
    %32 = vector.load %arg5[%c0_16, %c0_17, %c0_18] : memref<1x16x256xf32, #tpu.memory_space<vmem>>, vector<1x16x256xf32>
    %33 = vector.shape_cast %32 : vector<1x16x256xf32> to vector<16x256xf32>
    %34 = vector.shape_cast %31 : vector<16x256xf32> to vector<1x16x256xf32>
    tpu.vector_store %arg5[%c0_16, %c0_17, %c0_18], %34 {strides = array<i32>} : memref<1x16x256xf32, #tpu.memory_space<vmem>>, vector<1x16x256xf32>,
    return
  }
  func.func @transform_0(%arg0: i32) -> (i32, i32, i32) {
    %c0_i32 = arith.constant 0 : i32
    %c0_i32_0 = arith.constant 0 : i32
    %c0_i32_1 = arith.constant 0 : i32
    return %arg0, %c0_i32, %c0_i32_0 : i32, i32, i32
  }
  func.func @transform_1(%arg0: i32) -> (i32, i32) {
    %c0_i32 = arith.constant 0 : i32
    %c0_i32_0 = arith.constant 0 : i32
    %c0_i32_1 = arith.constant 0 : i32
    return %c0_i32, %c0_i32_0 : i32, i32
  }
  func.func @transform_2(%arg0: i32) -> (i32, i32) {
    %c0_i32 = arith.constant 0 : i32
    %c0_i32_0 = arith.constant 0 : i32
    %c0_i32_1 = arith.constant 0 : i32
    return %c0_i32, %c0_i32_0 : i32, i32
  }
  func.func @transform_3(%arg0: i32) -> (i32, i32) {
    %c0_i32 = arith.constant 0 : i32
    %c0_i32_0 = arith.constant 0 : i32
    %c0_i32_1 = arith.constant 0 : i32
    return %c0_i32, %c0_i32_0 : i32, i32
  }
  func.func @transform_4(%arg0: i32) -> (i32, i32, i32) {
    %c0_i32 = arith.constant 0 : i32
    %c0_i32_0 = arith.constant 0 : i32
    %c0_i32_1 = arith.constant 0 : i32
    return %arg0, %c0_i32, %c0_i32_0 : i32, i32, i32
  }
}

</mosaic_0001>

<llo_original>
// kernel: reverse.4
$region0: #{reverse.4}
  #allocation0 [shape = 's32[1]{0}', space=sflag, size = 0x4, scoped, tag = 'scoped memory for reverse.4']
  %s0 = inlined_call_operand.vmem [shape: f32[256,16,7], index: 0, kind: input, shape index: {}]
  %s1 = inlined_call_operand.vmem [shape: f32[256,16,7], index: 1, kind: output, shape index: {}]
  %s2 = scalar_lea.vmem %s0, 192
  %v3 = vld [vmem:[%s2] sm:$0xff]
  %4 = vst [vmem:[%s1] sm:$0xff] %v3
  %s5 = scalar_lea.vmem %s0, 160
  %v6 = vld [vmem:[%s5] sm:$0xff]
  %s7 = scalar_lea.vmem %s1, 32
  %8 = vst [vmem:[%s7] sm:$0xff] %v6
  %s9 = scalar_lea.vmem %s0, 128
  %v10 = vld [vmem:[%s9] sm:$0xff]
  %s11 = scalar_lea.vmem %s1, 64
  %12 = vst [vmem:[%s11] sm:$0xff] %v10
  %s13 = scalar_lea.vmem %s0, 96
  %v14 = vld [vmem:[%s13] sm:$0xff]
  %s15 = scalar_lea.vmem %s1, 96
  %16 = vst [vmem:[%s15] sm:$0xff] %v14
  %s17 = scalar_lea.vmem %s0, 64
  %v18 = vld [vmem:[%s17] sm:$0xff]
  %s19 = scalar_lea.vmem %s1, 128
  %20 = vst [vmem:[%s19] sm:$0xff] %v18
  %s21 = scalar_lea.vmem %s0, 32
  %v22 = vld [vmem:[%s21] sm:$0xff]
  %s23 = scalar_lea.vmem %s1, 160
  %24 = vst [vmem:[%s23] sm:$0xff] %v22
  %v25 = vld [vmem:[%s0] sm:$0xff]
  %s26 = scalar_lea.vmem %s1, 192
  %27 = vst [vmem:[%s26] sm:$0xff] %v25
  %s28 = scalar_lea.vmem %s0, 208
  %v29 = vld [vmem:[%s28] sm:$0xff]
  %s30 = scalar_lea.vmem %s1, 16
  %31 = vst [vmem:[%s30] sm:$0xff] %v29
  %s32 = scalar_lea.vmem %s0, 176
  %v33 = vld [vmem:[%s32] sm:$0xff]
  %s34 = scalar_lea.vmem %s1, 48
  %35 = vst [vmem:[%s34] sm:$0xff] %v33
  %s36 = scalar_lea.vmem %s0, 144
  %v37 = vld [vmem:[%s36] sm:$0xff]
  %s38 = scalar_lea.vmem %s1, 80
  %39 = vst [vmem:[%s38] sm:$0xff] %v37
  %s40 = scalar_lea.vmem %s0, 112
  %v41 = vld [vmem:[%s40] sm:$0xff]
  %s42 = scalar_lea.vmem %s1, 112
  %43 = vst [vmem:[%s42] sm:$0xff] %v41
  %s44 = scalar_lea.vmem %s0, 80
  %v45 = vld [vmem:[%s44] sm:$0xff]
  %s46 = scalar_lea.vmem %s1, 144
  %47 = vst [vmem:[%s46] sm:$0xff] %v45
  %s48 = scalar_lea.vmem %s0, 48
  %v49 = vld [vmem:[%s48] sm:$0xff]
  %s50 = scalar_lea.vmem %s1, 176
  %51 = vst [vmem:[%s50] sm:$0xff] %v49
  %s52 = scalar_lea.vmem %s0, 16
  %v53 = vld [vmem:[%s52] sm:$0xff]
  %s54 = scalar_lea.vmem %s1, 208
  %55 = vst [vmem:[%s54] sm:$0xff] %v53
  %s56 = scalar_lea.vmem %s0, 200
  %v57 = vld [vmem:[%s56] sm:$0xff]
  %s58 = scalar_lea.vmem %s1, 8
  %59 = vst [vmem:[%s58] sm:$0xff] %v57
  %s60 = scalar_lea.vmem %s0, 168
  %v61 = vld [vmem:[%s60] sm:$0xff]
  %s62 = scalar_lea.vmem %s1, 40
  %63 = vst [vmem:[%s62] sm:$0xff] %v61
  %s64 = scalar_lea.vmem %s0, 136
  %v65 = vld [vmem:[%s64] sm:$0xff]
  %s66 = scalar_lea.vmem %s1, 72
  %67 = vst [vmem:[%s66] sm:$0xff] %v65
  %s68 = scalar_lea.vmem %s0, 104
  %v69 = vld [vmem:[%s68] sm:$0xff]
  %s70 = scalar_lea.vmem %s1, 104
  %71 = vst [vmem:[%s70] sm:$0xff] %v69
  %s72 = scalar_lea.vmem %s0, 72
  %v73 = vld [vmem:[%s72] sm:$0xff]
  %s74 = scalar_lea.vmem %s1, 136
  %75 = vst [vmem:[%s74] sm:$0xff] %v73
  %s76 = scalar_lea.vmem %s0, 40
  %v77 = vld [vmem:[%s76] sm:$0xff]
  %s78 = scalar_lea.vmem %s1, 168
  %79 = vst [vmem:[%s78] sm:$0xff] %v77
  %s80 = scalar_lea.vmem %s0, 8
  %v81 = vld [vmem:[%s80] sm:$0xff]
  %s82 = scalar_lea.vmem %s1, 200
  %83 = vst [vmem:[%s82] sm:$0xff] %v81
  %s84 = scalar_lea.vmem %s0, 216
  %v85 = vld [vmem:[%s84] sm:$0xff]
  %s86 = scalar_lea.vmem %s1, 24
  %87 = vst [vmem:[%s86] sm:$0xff] %v85
  %s88 = scalar_lea.vmem %s0, 184
  %v89 = vld [vmem:[%s88] sm:$0xff]
  %s90 = scalar_lea.vmem %s1, 56
  %91 = vst [vmem:[%s90] sm:$0xff] %v89
  %s92 = scalar_lea.vmem %s0, 152
  %v93 = vld [vmem:[%s92] sm:$0xff]
  %s94 = scalar_lea.vmem %s1, 88
  %95 = vst [vmem:[%s94] sm:$0xff] %v93
  %s96 = scalar_lea.vmem %s0, 120
  %v97 = vld [vmem:[%s96] sm:$0xff]
  %s98 = scalar_lea.vmem %s1, 120
  %99 = vst [vmem:[%s98] sm:$0xff] %v97
  %s100 = scalar_lea.vmem %s0, 88
  %v101 = vld [vmem:[%s100] sm:$0xff]
  %s102 = scalar_lea.vmem %s1, 152
  %103 = vst [vmem:[%s102] sm:$0xff] %v101
  %s104 = scalar_lea.vmem %s0, 56
  %v105 = vld [vmem:[%s104] sm:$0xff]
  %s106 = scalar_lea.vmem %s1, 184
  %107 = vst [vmem:[%s106] sm:$0xff] %v105
  %s108 = scalar_lea.vmem %s0, 24
  %v109 = vld [vmem:[%s108] sm:$0xff]
  %s110 = scalar_lea.vmem %s1, 216
  %111 = vst [vmem:[%s110] sm:$0xff] %v109

// kernel: fpu_forward.1
$region0: #{fpu_forward.1}
  #allocation0 [shape = 'u32[]', space=smem, size = 0x4, offset = 0x4, fixed_abs, tag = 'smem constant byte address 0x4 - core index']
  #allocation1 [shape = 'u32[144,128]{1,0:T(1,128)}', space=vmem, size = 0x12000, scoped, tag = 'internal scratch']
  %s0 = inlined_call_operand.vmem [shape: f32[2,16,256], index: 0, kind: input, shape index: {}]
  %s1 = inlined_call_operand.vmem [shape: bf16[64,33], index: 1, kind: input, shape index: {}]
  %s2 = inlined_call_operand.vmem [shape: bf16[32,65], index: 2, kind: input, shape index: {}]
  %s3 = inlined_call_operand.vmem [shape: f32[512,256], index: 3, kind: input, shape index: {}]
  %s4 = inlined_call_operand.vmem [shape: f32[2,16,256], index: 4, kind: output, shape index: {}]
  %s5 = sld [smem:[#allocation0]]
  $region49: #{fpu_forward.1} parent=0
    _
  %s7 = ssub.s32 1, %s5
  %s8 = scalar_select 0, %s7, %s5
  loop: start=0, step=1, limit=4
  $region2: #{fpu_forward.1} parent=0 // loop_pre_header
    _
  $region3: #{fpu_forward.1} parent=0 // loop_header
    %s10 = sphi 0, %s14
    %p11 = scmp.ge.s32.totalorder %s10, 4
    %s20 = sphi 0, %s22
    %s23 = sphi 0, %s20
    %s24 = sphi 0, %s23
    %s40 = sphi 0, %s24
    %s44 = sphi 0, %s44
    %s46 = sphi 0, %s44
    %s47 = sphi 0, %s46
    %s61 = sphi 0, %s47
    %s65 = sphi 0, %s65
    %s67 = sphi 0, %s65
    %s68 = sphi 0, %s67
    %s82 = sphi 0, %s68
    %s86 = sphi 0, %s86
    %s88 = sphi 0, %s86
    %s89 = sphi 0, %s88
    %s103 = sphi 0, %s89
    %s109 = sphi 0, %s111
    %s112 = sphi 0, %s109
    %s113 = sphi 0, %s112
    %s129 = sphi 0, %s113
  $region4: #{fpu_forward.1} parent=0 // loop_header_branch
    %13 = sbr.rel (%p11) target = $region8
  $region5: #{fpu_forward.1} parent=0 // loop_body
    %s15 = ssub.s32 %s10, 1
    %s16 = ssub.s32 %s10, 2
    %s17 = sadd.s32 %s10, 1
    %s18 = ssub.s32 %s10, %s17
    %p19 = scmp.eq.s32.totalorder %s18, 0
    %s21 = sadd.s32 %s20, 1
    %s22 = scalar_select %p19, %s20, %s21
    %p25 = pneg %p19
    %p26 = scmp.eq.s32.totalorder %s10, 1
    %p27 = por %p25, %p26
    %p28 = scmp.ne.s32.totalorder %s20, %s23
    %p29 = scmp.eq.s32.totalorder %s10, 0
    %p30 = por %p28, %p29
    %p31 = scmp.ne.s32.totalorder %s20, %s23
    %p32 = scmp.eq.s32.totalorder %s15, 1
    %p33 = por %p31, %p32
    %p34 = scmp.ne.s32.totalorder %s23, %s24
    %p35 = scmp.eq.s32.totalorder %s15, 0
    %p36 = por %p34, %p35
    %p37 = scmp.ne.s32.totalorder %s23, %s24
    %p38 = scmp.eq.s32.totalorder %s16, 1
    %p39 = por %p37, %p38
    %p41 = scmp.ne.s32.totalorder %s24, %s40
    %p42 = scmp.eq.s32.totalorder %s16, 0
    %p43 = por %p41, %p42
    %s45 = sadd.s32 %s44, 1
    %p48 = scmp.eq.s32.totalorder %s10, 1
    %p49 = scmp.ne.s32.totalorder %s44, %s46
    %p50 = scmp.eq.s32.totalorder %s10, 0
    %p51 = por %p49, %p50
    %p52 = scmp.ne.s32.totalorder %s44, %s46
    %p53 = scmp.eq.s32.totalorder %s15, 1
    %p54 = por %p52, %p53
    %p55 = scmp.ne.s32.totalorder %s46, %s47
    %p56 = scmp.eq.s32.totalorder %s15, 0
    %p57 = por %p55, %p56
    %p58 = scmp.ne.s32.totalorder %s46, %s47
    %p59 = scmp.eq.s32.totalorder %s16, 1
    %p60 = por %p58, %p59
    %p62 = scmp.ne.s32.totalorder %s47, %s61
    %p63 = scmp.eq.s32.totalorder %s16, 0
    %p64 = por %p62, %p63
    %s66 = sadd.s32 %s65, 1
    %p69 = scmp.eq.s32.totalorder %s10, 1
    %p70 = scmp.ne.s32.totalorder %s65, %s67
    %p71 = scmp.eq.s32.totalorder %s10, 0
    %p72 = por %p70, %p71
    %p73 = scmp.ne.s32.totalorder %s65, %s67
    %p74 = scmp.eq.s32.totalorder %s15, 1
    %p75 = por %p73, %p74
    %p76 = scmp.ne.s32.totalorder %s67, %s68
    %p77 = scmp.eq.s32.totalorder %s15, 0
    %p78 = por %p76, %p77
    %p79 = scmp.ne.s32.totalorder %s67, %s68
    %p80 = scmp.eq.s32.totalorder %s16, 1
    %p81 = por %p79, %p80
    %p83 = scmp.ne.s32.totalorder %s68, %s82
    %p84 = scmp.eq.s32.totalorder %s16, 0
    %p85 = por %p83, %p84
    %s87 = sadd.s32 %s86, 1
    %p90 = scmp.eq.s32.totalorder %s10, 1
    %p91 = scmp.ne.s32.totalorder %s86, %s88
    %p92 = scmp.eq.s32.totalorder %s10, 0
    %p93 = por %p91, %p92
    %p94 = scmp.ne.s32.totalorder %s86, %s88
    %p95 = scmp.eq.s32.totalorder %s15, 1
    %p96 = por %p94, %p95
    %p97 = scmp.ne.s32.totalorder %s88, %s89
    %p98 = scmp.eq.s32.totalorder %s15, 0
    %p99 = por %p97, %p98
    %p100 = scmp.ne.s32.totalorder %s88, %s89
    %p101 = scmp.eq.s32.totalorder %s16, 1
    %p102 = por %p100, %p101
    %p104 = scmp.ne.s32.totalorder %s89, %s103
    %p105 = scmp.eq.s32.totalorder %s16, 0
    %p106 = por %p104, %p105
    %s107 = ssub.s32 %s10, %s17
    %p108 = scmp.eq.s32.totalorder %s107, 0
    %s110 = sadd.s32 %s109, 1
    %s111 = scalar_select %p108, %s109, %s110
    %p114 = pneg %p108
    %p115 = scmp.eq.s32.totalorder %s10, 1
    %p116 = por %p114, %p115
    %p117 = scmp.ne.s32.totalorder %s109, %s112
    %p118 = scmp.eq.s32.totalorder %s10, 0
    %p119 = por %p117, %p118
    %p120 = scmp.ne.s32.totalorder %s109, %s112
    %p121 = scmp.eq.s32.totalorder %s15, 1
    %p122 = por %p120, %p121
    %p123 = scmp.ne.s32.totalorder %s112, %s113
    %p124 = scmp.eq.s32.totalorder %s15, 0
    %p125 = por %p123, %p124
    %p126 = scmp.ne.s32.totalorder %s112, %s113
    %p127 = scmp.eq.s32.totalorder %s16, 1
    %p128 = por %p126, %p127
    %p130 = scmp.ne.s32.totalorder %s113, %s129
    %p131 = scmp.eq.s32.totalorder %s16, 0
    %p132 = por %p130, %p131
    %p133 = scmp.le.s32.totalorder 1, %s10
    %p134 = scmp.lt.s32.totalorder %s10, 3
    %p135 = pnand %p133, %p134
    %p136 = pneg %p135
    // Predicated region
    $region9: #{fpu_forward.1} parent=5 // pred_check
      _
    $region10: #{fpu_forward.1} parent=5 // pred_check_branch
      %138 = sbr.rel (%p135) target = $region12
    $region11: #{fpu_forward.1} parent=5 // pred_region
      %s139 = ssub.s32 %s10, 1
      // Predicated region
      $region13: #{fpu_forward.1} parent=11 // pred_check
        %p140 = pneg %p57
      $region14: #{fpu_forward.1} parent=11 // pred_check_branch
        %142 = sbr.rel (%p140) target = $region16
      $region15: #{fpu_forward.1} parent=11 // pred_region
        _
      $region16: #{fpu_forward.1} parent=11 // pred_fallthru
        _
      // Predicated region
      $region17: #{fpu_forward.1} parent=11 // pred_check
        %p143 = pneg %p78
      $region18: #{fpu_forward.1} parent=11 // pred_check_branch
        %145 = sbr.rel (%p143) target = $region20
      $region19: #{fpu_forward.1} parent=11 // pred_region
        _
      $region20: #{fpu_forward.1} parent=11 // pred_fallthru
        _
      // Predicated region
      $region21: #{fpu_forward.1} parent=11 // pred_check
        %p146 = pneg %p99
      $region22: #{fpu_forward.1} parent=11 // pred_check_branch
        %148 = sbr.rel (%p146) target = $region24
      $region23: #{fpu_forward.1} parent=11 // pred_region
        _
      $region24: #{fpu_forward.1} parent=11 // pred_fallthru
        _
    $region12: #{fpu_forward.1} parent=5 // pred_fallthru
      _
    %p149 = scmp.lt.s32.totalorder %s10, 2
    // Predicated region
    $region25: #{fpu_forward.1} parent=5 // pred_check
      %p150 = pneg %p149
    $region26: #{fpu_forward.1} parent=5 // pred_check_branch
      %152 = sbr.rel (%p150) target = $region28
    $region27: #{fpu_forward.1} parent=5 // pred_region
      // Predicated region
      $region29: #{fpu_forward.1} parent=27 // pred_check
        %p153 = pneg %p30
      $region30: #{fpu_forward.1} parent=27 // pred_check_branch
        %155 = sbr.rel (%p153) target = $region32
      $region31: #{fpu_forward.1} parent=27 // pred_region
        %p156 = scmp.lt.s32.totalorder %s10, 1
        %s157 = scalar_select %p156, %s10, 1
        %s158 = smul.addr %s157, 4
        %s159 = smul.addr %s158, 8
        %s160 = scalar_lea.vmem %s0, %s159
      $region32: #{fpu_forward.1} parent=27 // pred_fallthru
        _
    $region28: #{fpu_forward.1} parent=5 // pred_fallthru
      _
    %p161 = scmp.le.s32.totalorder 1, %s10
    %p162 = scmp.lt.s32.totalorder %s10, 3
    %p163 = pnand %p161, %p162
    %p164 = pneg %p163
    // Predicated region
    $region33: #{fpu_forward.1} parent=5 // pred_check
      _
    $region34: #{fpu_forward.1} parent=5 // pred_check_branch
      %166 = sbr.rel (%p163) target = $region36
    $region35: #{fpu_forward.1} parent=5 // pred_region
      %s167 = ssub.s32 %s10, 1
      %p168 = scmp.lt.s32.totalorder %s15, 1
      %s169 = scalar_select %p168, %s15, 1
      %s170 = smul.addr %s169, 4
      %s171 = smul.addr %s170, 8
      %s172 = scalar_lea.vmem %s0, %s171
      %p173 = pneg %p36
      %p174 = pneg %p33
      %p175 = pneg %p57
      %p176 = pneg %p54
      %p177 = pneg %p78
      %p178 = pneg %p75
      %p179 = pneg %p99
      %p180 = pneg %p96
      %p181 = pneg %p125
      %p182 = pneg %p122
      %p183 = scmp.lt.s32.totalorder %s15, 1
      %s184 = scalar_select %p183, %s15, 1
      %s185 = smul.addr %s184, 4
      %s186 = smul.addr %s185, 8
      %s187 = scalar_lea.vmem %s4, %s186
      %p188 = scmp.lt.s32.totalorder %s15, 1
      %s189 = scalar_select %p188, %s15, 1
      %s190 = smul.addr %s189, 4
      %s191 = smul.addr %s190, 8
      %s192 = scalar_lea.vmem %s0, %s191
      %p193 = scmp.lt.s32.totalorder %s15, 1
      %s194 = scalar_select %p193, %s15, 1
      %s195 = smul.addr %s194, 4
      %s196 = smul.addr %s195, 8
      %s197 = scalar_lea.vmem %s4, %s196
      %v199 = vld [vmem:[%s192] sm:$0xff]
      %v200 = vld [vmem:[%s192 + $0x8] sm:$0xff]
      %v201 = vld [vmem:[%s192 + $0x10] sm:$0xff]
      %v202 = vld [vmem:[%s192 + $0x18] sm:$0xff]
      %v203 = vadd.f32 %v199, 1e-08
      %v204 = vadd.f32 %v200, 1e-08
      %v205 = vadd.f32 %v201, 1e-08
      %v206 = vadd.f32 %v202, 1e-08
      %v207 = vand.u32 2147483647, %v203
      %v208 = vand.u32 2147483647, %v204
      %v209 = vand.u32 2147483647, %v205
      %v210 = vand.u32 2147483647, %v206
      %vm211 = vcmp.ge.f32.partialorder %v203, 0.0
      %vm212 = vcmp.ge.f32.partialorder %v204, 0.0
      %vm213 = vcmp.ge.f32.partialorder %v205, 0.0
      %vm214 = vcmp.ge.f32.partialorder %v206, 0.0
      %v215 = vsel %vm211, 0.0, 3.1415927
      %v216 = vsel %vm212, 0.0, 3.1415927
      %v217 = vsel %vm213, 0.0, 3.1415927
      %v218 = vsel %vm214, 0.0, 3.1415927
      %v219 = vpack.c.bf16 %v209, %v207
      %v220 = vpack.c.bf16 %v210, %v208
      %v221 = vpack.c.bf16 %v217, %v215
      %v222 = vpack.c.bf16 %v218, %v216
      %v223 = vpack.c.bf16 1.0, 1.0
      %v224 = vld [vmem:[%s1] sm:$0xf]
      %v225 = vld [vmem:[%s1 + $0x4] sm:$0xf]
      %v226 = vld [vmem:[%s1 + $0x8] sm:$0xf]
      %v227 = vld [vmem:[%s1 + $0xc] sm:$0xf]
      %v228 = vld [vmem:[%s1 + $0x10] sm:$0xf]
      %v229 = vld [vmem:[%s1 + $0x14] sm:$0xf]
      %v230 = vld [vmem:[%s1 + $0x18] sm:$0xf]
      %v231 = vld [vmem:[%s1 + $0x1c] sm:$0xf]
      %v240 = vunpack.c.l.b16 %v224
      %v241 = vunpack.c.l.b16 %v225
      %v242 = vunpack.c.l.b16 %v226
      %v243 = vunpack.c.l.b16 %v227
      %v244 = vunpack.c.l.b16 %v228
      %v245 = vunpack.c.l.b16 %v229
      %v246 = vunpack.c.l.b16 %v230
      %v247 = vunpack.c.l.b16 %v231
      %v248 = vpack.c.b16 %v241, %v240
      %v249 = vpack.c.b16 %v243, %v242
      %v250 = vpack.c.b16 %v245, %v244
      %v251 = vpack.c.b16 %v247, %v246
      %vm252 = vcmask 269312
      %v254 = vsel %vm252, %v248, 0
      %v257 = vsel %vm252, %v249, 0
      %v260 = vsel %vm252, %v250, 0
      %v263 = vsel %vm252, %v251, 0
      %vm265 = vcmask 1040384
      %v266 = vsel 0, 4294967295, 65535
      %v267 = vsel %vm265, %v266, 0
      %v269 = vand.u32 %v223, %v267
      %271 = vmatprep.subr.bf16.mxu0 %v220
      %272 = vmatpush1.bf16.msra.mxu0 %v219
      %273 = vmatprep.subr.bf16.mxu0 %v222
      %274 = vmatpush1.bf16.msra.mxu0 %v221
      %275 = vmatprep.subr.bf16.mxu0 %v269
      %276 = vmatpush1.bf16.msra.mxu0 %v269
      %277 = vmatprep.subr.bf16.mxu0 0
      %278 = vmatpush1.bf16.msra.mxu0 0
      %279 = vmatprep.subr.bf16.mxu0 0
      %280 = vmatpush1.bf16.msra.mxu0 0
      %281 = vmatprep.subr.bf16.mxu0 0
      %282 = vmatpush1.bf16.msra.mxu0 0
      %283 = vmatprep.subr.bf16.mxu0 0
      %284 = vmatpush1.bf16.msra.mxu0 0
      %285 = vmatprep.subr.bf16.mxu0 0
      %286 = vmatpush1.bf16.msra.mxu0 0
      %287 = vmatprep.subr.bf16.mxu0 0
      %288 = vmatpush1.bf16.msra.mxu0 0
      %289 = vmatprep.subr.bf16.mxu0 0
      %290 = vmatpush1.bf16.msra.mxu0 0
      %291 = vmatprep.subr.bf16.mxu0 0
      %292 = vmatpush1.bf16.msra.mxu0 0
      %293 = vmatprep.subr.bf16.mxu0 0
      %294 = vmatpush1.bf16.msra.mxu0 0
      %295 = vmatprep.subr.bf16.mxu0 0
      %296 = vmatpush1.bf16.msra.mxu0 0
      %297 = vmatprep.subr.bf16.mxu0 0
      %298 = vmatpush1.bf16.msra.mxu0 0
      %299 = vmatprep.subr.bf16.mxu0 0
      %300 = vmatpush1.bf16.msra.mxu0 0
      %301 = vmatprep.subr.bf16.mxu0 0
      %302 = vmatpush1.bf16.msra.mxu0 0
      %303 = vmatprep.mubr.bf16.mxu0 0
      %304 = vmatmul.mubr.bf16.gmra.mrb[0].mxu0 %v254
      %v305 = vpop.f32.mrb[0].mxu0
      %v306 = vadd.f32 0.0, %v305
      %v307 = vpop.f32.mrb[0].mxu0
      %v308 = vadd.f32 0.0, %v307
      %v309 = vpop.f32.mrb[0].mxu0
      %v310 = vadd.f32 0.0, %v309
      %v311 = vpop.f32.mrb[0].mxu0
      %v312 = vadd.f32 0.0, %v311
      %313 = vmatprep.mubr.bf16.mxu0 0
      %314 = vmatmul.mubr.bf16.gmra.mrb[0].mxu0 %v257
      %v315 = vpop.f32.mrb[0].mxu0
      %v316 = vadd.f32 0.0, %v315
      %v317 = vpop.f32.mrb[0].mxu0
      %v318 = vadd.f32 0.0, %v317
      %v319 = vpop.f32.mrb[0].mxu0
      %v320 = vadd.f32 0.0, %v319
      %v321 = vpop.f32.mrb[0].mxu0
      %v322 = vadd.f32 0.0, %v321
      %323 = vmatprep.mubr.bf16.mxu0 0
      %324 = vmatmul.mubr.bf16.gmra.mrb[0].mxu0 %v260
      %v325 = vpop.f32.mrb[0].mxu0
      %v326 = vadd.f32 0.0, %v325
      %v327 = vpop.f32.mrb[0].mxu0
      %v328 = vadd.f32 0.0, %v327
      %v329 = vpop.f32.mrb[0].mxu0
      %v330 = vadd.f32 0.0, %v329
      %v331 = vpop.f32.mrb[0].mxu0
      %v332 = vadd.f32 0.0, %v331
      %333 = vmatprep.mubr.bf16.mxu0 0
      %334 = vmatmul.mubr.bf16.gmra.mrb[0].mxu0 %v263
      %v335 = vpop.f32.mrb[0].mxu0
      %v336 = vadd.f32 0.0, %v335
      %v337 = vpop.f32.mrb[0].mxu0
      %v338 = vadd.f32 0.0, %v337
      %v339 = vpop.f32.mrb[0].mxu0
      %v340 = vadd.f32 0.0, %v339
      %v341 = vpop.f32.mrb[0].mxu0
      %v342 = vadd.f32 0.0, %v341
      %343 = vdwg.mxu0
      %v344 = vtanh.pop %v306
      %v345 = vtanh.pop %v308
      %v346 = vtanh.pop %v310
      %v347 = vtanh.pop %v312
      %v348 = vtanh.pop %v316
      %v349 = vtanh.pop %v318
      %v350 = vtanh.pop %v320
      %v351 = vtanh.pop %v322
      %v352 = vtanh.pop %v326
      %v353 = vtanh.pop %v328
      %v354 = vtanh.pop %v330
      %v355 = vtanh.pop %v332
      %v356 = vtanh.pop %v336
      %v357 = vtanh.pop %v338
      %v358 = vtanh.pop %v340
      %v359 = vtanh.pop %v342
      %v360 = vpack.c.bf16 %v346, %v344
      %v361 = vpack.c.bf16 %v347, %v345
      %v362 = vpack.c.bf16 %v350, %v348
      %v363 = vpack.c.bf16 %v351, %v349
      %v364 = vpack.c.bf16 %v354, %v352
      %v365 = vpack.c.bf16 %v355, %v353
      %v366 = vpack.c.bf16 %v358, %v356
      %v367 = vpack.c.bf16 %v359, %v357
      %v368 = vld [vmem:[%s2] sm:$0xf]
      %v369 = vld [vmem:[%s2 + $0x4] sm:$0xf]
      %v370 = vld [vmem:[%s2 + $0x8] sm:$0xf]
      %v371 = vld [vmem:[%s2 + $0xc] sm:$0xf]
      %v376 = vunpack.c.l.b16 %v368
      %v377 = vunpack.c.l.b16 %v369
      %v378 = vunpack.c.l.b16 %v370
      %v379 = vunpack.c.l.b16 %v371
      %v380 = vpack.c.b16 %v377, %v376
      %v381 = vpack.c.b16 %v379, %v378
      %vm382 = vcmask 531456
      %v384 = vsel %vm382, %v380, 0
      %v387 = vsel %vm382, %v381, 0
      %389 = vmatprep.subr.bf16.mxu0 %v361
      %390 = vmatpush1.bf16.msra.mxu0 %v360
      %391 = vmatprep.subr.bf16.mxu0 %v363
      %392 = vmatpush1.bf16.msra.mxu0 %v362
      %393 = vmatprep.subr.bf16.mxu0 %v365
      %394 = vmatpush1.bf16.msra.mxu0 %v364
      %395 = vmatprep.subr.bf16.mxu0 %v367
      %396 = vmatpush1.bf16.msra.mxu0 %v366
      %397 = vmatprep.subr.bf16.mxu0 %v269
      %398 = vmatpush1.bf16.msra.mxu0 %v269
      %399 = vmatprep.subr.bf16.mxu0 0
      %400 = vmatpush1.bf16.msra.mxu0 0
      %401 = vmatprep.subr.bf16.mxu0 0
      %402 = vmatpush1.bf16.msra.mxu0 0
      %403 = vmatprep.subr.bf16.mxu0 0
      %404 = vmatpush1.bf16.msra.mxu0 0
      %405 = vmatprep.subr.bf16.mxu0 0
      %406 = vmatpush1.bf16.msra.mxu0 0
      %407 = vmatprep.subr.bf16.mxu0 0
      %408 = vmatpush1.bf16.msra.mxu0 0
      %409 = vmatprep.subr.bf16.mxu0 0
      %410 = vmatpush1.bf16.msra.mxu0 0
      %411 = vmatprep.subr.bf16.mxu0 0
      %412 = vmatpush1.bf16.msra.mxu0 0
      %413 = vmatprep.subr.bf16.mxu0 0
      %414 = vmatpush1.bf16.msra.mxu0 0
      %415 = vmatprep.subr.bf16.mxu0 0
      %416 = vmatpush1.bf16.msra.mxu0 0
      %417 = vmatprep.subr.bf16.mxu0 0
      %418 = vmatpush1.bf16.msra.mxu0 0
      %419 = vmatprep.subr.bf16.mxu0 0
      %420 = vmatpush1.bf16.msra.mxu0 0
      %421 = vmatprep.mubr.bf16.mxu0 0
      %422 = vmatmul.mubr.bf16.gmra.mrb[0].mxu0 %v384
      %v423 = vpop.f32.mrb[0].mxu0
      %v424 = vadd.f32 0.0, %v423
      %v425 = vpop.f32.mrb[0].mxu0
      %v426 = vadd.f32 0.0, %v425
      %v427 = vpop.f32.mrb[0].mxu0
      %v428 = vadd.f32 0.0, %v427
      %v429 = vpop.f32.mrb[0].mxu0
      %v430 = vadd.f32 0.0, %v429
      %431 = vmatprep.mubr.bf16.mxu0 0
      %432 = vmatmul.mubr.bf16.gmra.mrb[0].mxu0 %v387
      %v433 = vpop.f32.mrb[0].mxu0
      %v434 = vadd.f32 0.0, %v433
      %v435 = vpop.f32.mrb[0].mxu0
      %v436 = vadd.f32 0.0, %v435
      %v437 = vpop.f32.mrb[0].mxu0
      %v438 = vadd.f32 0.0, %v437
      %v439 = vpop.f32.mrb[0].mxu0
      %v440 = vadd.f32 0.0, %v439
      %441 = vdwg.mxu0
      %v442 = vand.u32 2147483647, %v434
      %vm443 = vcmp.le.f32.partialorder %v442, 0.7853982
      %vm444 = vcmp.lt.s32.totalorder %v434, 0
      %v445 = vand.u32 %v434, 2139095040
      %v446 = vshrl.u32 %v445, 23
      %v447 = vsub.s32 %v446, 127
      %v448 = vand.u32 2147483647, %v434
      %v449 = vand.u32 %v448, 8388607
      %v450 = vor.u32 %v449, 8388608
      %v451 = vsub.s32 0, %v450
      %v452 = vadd.s32 %v447, 1
      %vm453 = vcmp.gt.s32.totalorder %v452, 0
      %v454 = vsel %vm453, %v452, 0
      %v455 = vshrl.u32 %v454, 5
      %v456 = vand.u32 %v454, 31
      %v457 = vsub.s32 32, %v456
      %v458 = vshrl.u32 683565275, %v457
      %v459 = vshll.u32 683565275, %v456
      %v460 = vshrl.u32 2475754826, %v457
      %v461 = vor.u32 %v459, %v460
      %v462 = vshll.u32 2475754826, %v456
      %v463 = vshrl.u32 2131351028, %v457
      %v464 = vor.u32 %v462, %v463
      %v465 = vshll.u32 2131351028, %v456
      %v466 = vshrl.u32 2102212464, %v457
      %v467 = vor.u32 %v465, %v466
      %v468 = vshll.u32 2102212464, %v456
      %v469 = vshrl.u32 920167782, %v457
      %v470 = vor.u32 %v468, %v469
      %v471 = vshll.u32 920167782, %v456
      %v472 = vshrl.u32 1326507024, %v457
      %v473 = vor.u32 %v471, %v472
      %vm474 = vcmp.lt.s32.totalorder %v455, 1
      %vm475 = vcmp.lt.s32.totalorder %v455, 2
      %vm476 = vcmp.lt.s32.totalorder %v455, 3
      %vm477 = vcmp.lt.s32.totalorder %v455, 4
      %v478 = vsel %vm474, %v458, %v461
      %v479 = vsel %vm477, %v467, 2102212464
      %v480 = vsel %vm476, %v464, %v479
      %v481 = vsel %vm475, %v478, %v480
      %v482 = vsel %vm474, %v461, %v464
      %v483 = vsel %vm477, %v470, 920167782
      %v484 = vsel %vm476, %v467, %v483
      %v485 = vsel %vm475, %v482, %v484
      %v486 = vsel %vm474, %v464, %v467
      %v487 = vsel %vm477, %v473, 1326507024
      %v488 = vsel %vm476, %v470, %v487
      %v489 = vsel %vm475, %v486, %v488
      %v490 = vshll.u32 %v450, 8
      %v491 = vmul.u32.u64.compose %v490, %v489
      %v492 = vextract.low.u32 %v491
      %v493 = vextract.high.u32 %v491
      %v494 = vmul.u32.u64.compose %v490, %v485
      %v495 = vextract.low.u32 %v494
      %v496 = vextract.high.u32 %v494
      %v497 = vmul.u32 %v490, %v481
      %v498 = vadd.s32 %v493, %v495
      %vm499 = vc.u32 %v493, %v495
      %v500 = vadd.s32 %v496, 1
      %v501 = vsel %vm499, %v500, %v496
      %v502 = vadd.s32 %v497, %v501
      %v503 = vadd.s32 %v502, 536870912
      %v504 = vshrl.u32 %v503, 30
      %v505 = vshll.u32 %v504, 30
      %v506 = vsub.s32 %v502, %v505
      %vm507 = vcmp.lt.s32.totalorder %v506, 0
      %v508 = vsub.s32 0, %v506
      %v509 = vsel %vm507, %v508, %v506
      %v510 = vclz %v509
      %v511 = vsub.s32 %v510, 2
      %vm512 = vcmp.gt.s32.totalorder 0, %v511
      %v513 = vsel %vm512, 0, %v511
      %v514 = vsub.s32 32, %v513
      %v515 = vshll.u32 %v506, %v513
      %v516 = vshrl.u32 %v498, %v514
      %v517 = vor.u32 %v515, %v516
      %v518 = vsub.s32 4294967266, %v513
      %v519 = vadd.s32 %v518, 127
      %v520 = vshll.u32 %v519, 23
      %v521 = vor.u32 4788187, %v520
      %v522 = vand.u32 2147483647, %v521
      %v524 = vcvt.s32.f32 %v517
      %v525 = vmul.f32 %v524, %v522
      %v526 = vxor.u32 %v525, 2147483648
      %v527 = vsel %vm444, %v526, %v525
      %v528 = vsub.s32 4, %v504
      %v529 = vsel %vm444, %v528, %v504
      %v530 = vsel %vm443, %v434, %v527
      %v531 = vsel %vm443, 0, %v529
      %v532 = vcosq.f32.pop %v530
      %v533 = vsinq.f32.pop %v530
      %vm534 = vweird.f32 %v434
      %v535 = vand.u32 %v531, 3
      %vm536 = vcmp.lt.s32.totalorder %v535, 2
      %vm537 = vcmp.eq.s32.totalorder %v535, 0
      %v538 = vxor.u32 %v533, 2147483648
      %v539 = vsel %vm537, %v532, %v538
      %vm540 = vcmp.eq.s32.totalorder %v535, 2
      %v541 = vxor.u32 %v532, 2147483648
      %v542 = vsel %vm540, %v541, %v533
      %v543 = vsel %vm536, %v539, %v542
      %v544 = vsel %vm534, nan, %v543
      %v545 = vand.u32 2147483647, %v436
      %vm546 = vcmp.le.f32.partialorder %v545, 0.7853982
      %vm547 = vcmp.lt.s32.totalorder %v436, 0
      %v548 = vand.u32 %v436, 2139095040
      %v549 = vshrl.u32 %v548, 23
      %v550 = vsub.s32 %v549, 127
      %v551 = vand.u32 2147483647, %v436
      %v552 = vand.u32 %v551, 8388607
      %v553 = vor.u32 %v552, 8388608
      %v554 = vsub.s32 0, %v553
      %v555 = vadd.s32 %v550, 1
      %vm556 = vcmp.gt.s32.totalorder %v555, 0
      %v557 = vsel %vm556, %v555, 0
      %v558 = vshrl.u32 %v557, 5
      %v559 = vand.u32 %v557, 31
      %v560 = vsub.s32 32, %v559
      %v561 = vshrl.u32 683565275, %v560
      %v562 = vshll.u32 683565275, %v559
      %v563 = vshrl.u32 2475754826, %v560
      %v564 = vor.u32 %v562, %v563
      %v565 = vshll.u32 2475754826, %v559
      %v566 = vshrl.u32 2131351028, %v560
      %v567 = vor.u32 %v565, %v566
      %v568 = vshll.u32 2131351028, %v559
      %v569 = vshrl.u32 2102212464, %v560
      %v570 = vor.u32 %v568, %v569
      %v571 = vshll.u32 2102212464, %v559
      %v572 = vshrl.u32 920167782, %v560
      %v573 = vor.u32 %v571, %v572
      %v574 = vshll.u32 920167782, %v559
      %v575 = vshrl.u32 1326507024, %v560
      %v576 = vor.u32 %v574, %v575
      %vm577 = vcmp.lt.s32.totalorder %v558, 1
      %vm578 = vcmp.lt.s32.totalorder %v558, 2
      %vm579 = vcmp.lt.s32.totalorder %v558, 3
      %vm580 = vcmp.lt.s32.totalorder %v558, 4
      %v581 = vsel %vm577, %v561, %v564
      %v582 = vsel %vm580, %v570, 2102212464
      %v583 = vsel %vm579, %v567, %v582
      %v584 = vsel %vm578, %v581, %v583
      %v585 = vsel %vm577, %v564, %v567
      %v586 = vsel %vm580, %v573, 920167782
      %v587 = vsel %vm579, %v570, %v586
      %v588 = vsel %vm578, %v585, %v587
      %v589 = vsel %vm577, %v567, %v570
      %v590 = vsel %vm580, %v576, 1326507024
      %v591 = vsel %vm579, %v573, %v590
      %v592 = vsel %vm578, %v589, %v591
      %v593 = vshll.u32 %v553, 8
      %v594 = vmul.u32.u64.compose %v593, %v592
      %v595 = vextract.low.u32 %v594
      %v596 = vextract.high.u32 %v594
      %v597 = vmul.u32.u64.compose %v593, %v588
      %v598 = vextract.low.u32 %v597
      %v599 = vextract.high.u32 %v597
      %v600 = vmul.u32 %v593, %v584
      %v601 = vadd.s32 %v596, %v598
      %vm602 = vc.u32 %v596, %v598
      %v603 = vadd.s32 %v599, 1
      %v604 = vsel %vm602, %v603, %v599
      %v605 = vadd.s32 %v600, %v604
      %v606 = vadd.s32 %v605, 536870912
      %v607 = vshrl.u32 %v606, 30
      %v608 = vshll.u32 %v607, 30
      %v609 = vsub.s32 %v605, %v608
      %vm610 = vcmp.lt.s32.totalorder %v609, 0
      %v611 = vsub.s32 0, %v609
      %v612 = vsel %vm610, %v611, %v609
      %v613 = vclz %v612
      %v614 = vsub.s32 %v613, 2
      %vm615 = vcmp.gt.s32.totalorder 0, %v614
      %v616 = vsel %vm615, 0, %v614
      %v617 = vsub.s32 32, %v616
      %v618 = vshll.u32 %v609, %v616
      %v619 = vshrl.u32 %v601, %v617
      %v620 = vor.u32 %v618, %v619
      %v621 = vsub.s32 4294967266, %v616
      %v622 = vadd.s32 %v621, 127
      %v623 = vshll.u32 %v622, 23
      %v624 = vor.u32 4788187, %v623
      %v625 = vand.u32 2147483647, %v624
      %v627 = vcvt.s32.f32 %v620
      %v628 = vmul.f32 %v627, %v625
      %v629 = vxor.u32 %v628, 2147483648
      %v630 = vsel %vm547, %v629, %v628
      %v631 = vsub.s32 4, %v607
      %v632 = vsel %vm547, %v631, %v607
      %v633 = vsel %vm546, %v436, %v630
      %v634 = vsel %vm546, 0, %v632
      %v635 = vcosq.f32.pop %v633
      %v636 = vsinq.f32.pop %v633
      %vm637 = vweird.f32 %v436
      %v638 = vand.u32 %v634, 3
      %vm639 = vcmp.lt.s32.totalorder %v638, 2
      %vm640 = vcmp.eq.s32.totalorder %v638, 0
      %v641 = vxor.u32 %v636, 2147483648
      %v642 = vsel %vm640, %v635, %v641
      %vm643 = vcmp.eq.s32.totalorder %v638, 2
      %v644 = vxor.u32 %v635, 2147483648
      %v645 = vsel %vm643, %v644, %v636
      %v646 = vsel %vm639, %v642, %v645
      %v647 = vsel %vm637, nan, %v646
      %v648 = vand.u32 2147483647, %v438
      %vm649 = vcmp.le.f32.partialorder %v648, 0.7853982
      %vm650 = vcmp.lt.s32.totalorder %v438, 0
      %v651 = vand.u32 %v438, 2139095040
      %v652 = vshrl.u32 %v651, 23
      %v653 = vsub.s32 %v652, 127
      %v654 = vand.u32 2147483647, %v438
      %v655 = vand.u32 %v654, 8388607
      %v656 = vor.u32 %v655, 8388608
      %v657 = vsub.s32 0, %v656
      %v658 = vadd.s32 %v653, 1
      %vm659 = vcmp.gt.s32.totalorder %v658, 0
      %v660 = vsel %vm659, %v658, 0
      %v661 = vshrl.u32 %v660, 5
      %v662 = vand.u32 %v660, 31
      %v663 = vsub.s32 32, %v662
      %v664 = vshrl.u32 683565275, %v663
      %v665 = vshll.u32 683565275, %v662
      %v666 = vshrl.u32 2475754826, %v663
      %v667 = vor.u32 %v665, %v666
      %v668 = vshll.u32 2475754826, %v662
      %v669 = vshrl.u32 2131351028, %v663
      %v670 = vor.u32 %v668, %v669
      %v671 = vshll.u32 2131351028, %v662
      %v672 = vshrl.u32 2102212464, %v663
      %v673 = vor.u32 %v671, %v672
      %v674 = vshll.u32 2102212464, %v662
      %v675 = vshrl.u32 920167782, %v663
      %v676 = vor.u32 %v674, %v675
      %v677 = vshll.u32 920167782, %v662
      %v678 = vshrl.u32 1326507024, %v663
      %v679 = vor.u32 %v677, %v678
      %vm680 = vcmp.lt.s32.totalorder %v661, 1
      %vm681 = vcmp.lt.s32.totalorder %v661, 2
      %vm682 = vcmp.lt.s32.totalorder %v661, 3
      %vm683 = vcmp.lt.s32.totalorder %v661, 4
      %v684 = vsel %vm680, %v664, %v667
      %v685 = vsel %vm683, %v673, 2102212464
      %v686 = vsel %vm682, %v670, %v685
      %v687 = vsel %vm681, %v684, %v686
      %v688 = vsel %vm680, %v667, %v670
      %v689 = vsel %vm683, %v676, 920167782
      %v690 = vsel %vm682, %v673, %v689
      %v691 = vsel %vm681, %v688, %v690
      %v692 = vsel %vm680, %v670, %v673
      %v693 = vsel %vm683, %v679, 1326507024
      %v694 = vsel %vm682, %v676, %v693
      %v695 = vsel %vm681, %v692, %v694
      %v696 = vshll.u32 %v656, 8
      %v697 = vmul.u32.u64.compose %v696, %v695
      %v698 = vextract.low.u32 %v697
      %v699 = vextract.high.u32 %v697
      %v700 = vmul.u32.u64.compose %v696, %v691
      %v701 = vextract.low.u32 %v700
      %v702 = vextract.high.u32 %v700
      %v703 = vmul.u32 %v696, %v687
      %v704 = vadd.s32 %v699, %v701
      %vm705 = vc.u32 %v699, %v701
      %v706 = vadd.s32 %v702, 1
      %v707 = vsel %vm705, %v706, %v702
      %v708 = vadd.s32 %v703, %v707
      %v709 = vadd.s32 %v708, 536870912
      %v710 = vshrl.u32 %v709, 30
      %v711 = vshll.u32 %v710, 30
      %v712 = vsub.s32 %v708, %v711
      %vm713 = vcmp.lt.s32.totalorder %v712, 0
      %v714 = vsub.s32 0, %v712
      %v715 = vsel %vm713, %v714, %v712
      %v716 = vclz %v715
      %v717 = vsub.s32 %v716, 2
      %vm718 = vcmp.gt.s32.totalorder 0, %v717
      %v719 = vsel %vm718, 0, %v717
      %v720 = vsub.s32 32, %v719
      %v721 = vshll.u32 %v712, %v719
      %v722 = vshrl.u32 %v704, %v720
      %v723 = vor.u32 %v721, %v722
      %v724 = vsub.s32 4294967266, %v719
      %v725 = vadd.s32 %v724, 127
      %v726 = vshll.u32 %v725, 23
      %v727 = vor.u32 4788187, %v726
      %v728 = vand.u32 2147483647, %v727
      %v730 = vcvt.s32.f32 %v723
      %v731 = vmul.f32 %v730, %v728
      %v732 = vxor.u32 %v731, 2147483648
      %v733 = vsel %vm650, %v732, %v731
      %v734 = vsub.s32 4, %v710
      %v735 = vsel %vm650, %v734, %v710
      %v736 = vsel %vm649, %v438, %v733
      %v737 = vsel %vm649, 0, %v735
      %v738 = vcosq.f32.pop %v736
      %v739 = vsinq.f32.pop %v736
      %vm740 = vweird.f32 %v438
      %v741 = vand.u32 %v737, 3
      %vm742 = vcmp.lt.s32.totalorder %v741, 2
      %vm743 = vcmp.eq.s32.totalorder %v741, 0
      %v744 = vxor.u32 %v739, 2147483648
      %v745 = vsel %vm743, %v738, %v744
      %vm746 = vcmp.eq.s32.totalorder %v741, 2
      %v747 = vxor.u32 %v738, 2147483648
      %v748 = vsel %vm746, %v747, %v739
      %v749 = vsel %vm742, %v745, %v748
      %v750 = vsel %vm740, nan, %v749
      %v751 = vand.u32 2147483647, %v440
      %vm752 = vcmp.le.f32.partialorder %v751, 0.7853982
      %vm753 = vcmp.lt.s32.totalorder %v440, 0
      %v754 = vand.u32 %v440, 2139095040
      %v755 = vshrl.u32 %v754, 23
      %v756 = vsub.s32 %v755, 127
      %v757 = vand.u32 2147483647, %v440
      %v758 = vand.u32 %v757, 8388607
      %v759 = vor.u32 %v758, 8388608
      %v760 = vsub.s32 0, %v759
      %v761 = vadd.s32 %v756, 1
      %vm762 = vcmp.gt.s32.totalorder %v761, 0
      %v763 = vsel %vm762, %v761, 0
      %v764 = vshrl.u32 %v763, 5
      %v765 = vand.u32 %v763, 31
      %v766 = vsub.s32 32, %v765
      %v767 = vshrl.u32 683565275, %v766
      %v768 = vshll.u32 683565275, %v765
      %v769 = vshrl.u32 2475754826, %v766
      %v770 = vor.u32 %v768, %v769
      %v771 = vshll.u32 2475754826, %v765
      %v772 = vshrl.u32 2131351028, %v766
      %v773 = vor.u32 %v771, %v772
      %v774 = vshll.u32 2131351028, %v765
      %v775 = vshrl.u32 2102212464, %v766
      %v776 = vor.u32 %v774, %v775
      %v777 = vshll.u32 2102212464, %v765
      %v778 = vshrl.u32 920167782, %v766
      %v779 = vor.u32 %v777, %v778
      %v780 = vshll.u32 920167782, %v765
      %v781 = vshrl.u32 1326507024, %v766
      %v782 = vor.u32 %v780, %v781
      %vm783 = vcmp.lt.s32.totalorder %v764, 1
      %vm784 = vcmp.lt.s32.totalorder %v764, 2
      %vm785 = vcmp.lt.s32.totalorder %v764, 3
      %vm786 = vcmp.lt.s32.totalorder %v764, 4
      %v787 = vsel %vm783, %v767, %v770
      %v788 = vsel %vm786, %v776, 2102212464
      %v789 = vsel %vm785, %v773, %v788
      %v790 = vsel %vm784, %v787, %v789
      %v791 = vsel %vm783, %v770, %v773
      %v792 = vsel %vm786, %v779, 920167782
      %v793 = vsel %vm785, %v776, %v792
      %v794 = vsel %vm784, %v791, %v793
      %v795 = vsel %vm783, %v773, %v776
      %v796 = vsel %vm786, %v782, 1326507024
      %v797 = vsel %vm785, %v779, %v796
      %v798 = vsel %vm784, %v795, %v797
      %v799 = vshll.u32 %v759, 8
      %v800 = vmul.u32.u64.compose %v799, %v798
      %v801 = vextract.low.u32 %v800
      %v802 = vextract.high.u32 %v800
      %v803 = vmul.u32.u64.compose %v799, %v794
      %v804 = vextract.low.u32 %v803
      %v805 = vextract.high.u32 %v803
      %v806 = vmul.u32 %v799, %v790
      %v807 = vadd.s32 %v802, %v804
      %vm808 = vc.u32 %v802, %v804
      %v809 = vadd.s32 %v805, 1
      %v810 = vsel %vm808, %v809, %v805
      %v811 = vadd.s32 %v806, %v810
      %v812 = vadd.s32 %v811, 536870912
      %v813 = vshrl.u32 %v812, 30
      %v814 = vshll.u32 %v813, 30
      %v815 = vsub.s32 %v811, %v814
      %vm816 = vcmp.lt.s32.totalorder %v815, 0
      %v817 = vsub.s32 0, %v815
      %v818 = vsel %vm816, %v817, %v815
      %v819 = vclz %v818
      %v820 = vsub.s32 %v819, 2
      %vm821 = vcmp.gt.s32.totalorder 0, %v820
      %v822 = vsel %vm821, 0, %v820
      %v823 = vsub.s32 32, %v822
      %v824 = vshll.u32 %v815, %v822
      %v825 = vshrl.u32 %v807, %v823
      %v826 = vor.u32 %v824, %v825
      %v827 = vsub.s32 4294967266, %v822
      %v828 = vadd.s32 %v827, 127
      %v829 = vshll.u32 %v828, 23
      %v830 = vor.u32 4788187, %v829
      %v831 = vand.u32 2147483647, %v830
      %v833 = vcvt.s32.f32 %v826
      %v834 = vmul.f32 %v833, %v831
      %v835 = vxor.u32 %v834, 2147483648
      %v836 = vsel %vm753, %v835, %v834
      %v837 = vsub.s32 4, %v813
      %v838 = vsel %vm753, %v837, %v813
      %v839 = vsel %vm752, %v440, %v836
      %v840 = vsel %vm752, 0, %v838
      %v841 = vcosq.f32.pop %v839
      %v842 = vsinq.f32.pop %v839
      %vm843 = vweird.f32 %v440
      %v844 = vand.u32 %v840, 3
      %vm845 = vcmp.lt.s32.totalorder %v844, 2
      %vm846 = vcmp.eq.s32.totalorder %v844, 0
      %v847 = vxor.u32 %v842, 2147483648
      %v848 = vsel %vm846, %v841, %v847
      %vm849 = vcmp.eq.s32.totalorder %v844, 2
      %v850 = vxor.u32 %v841, 2147483648
      %v851 = vsel %vm849, %v850, %v842
      %v852 = vsel %vm845, %v848, %v851
      %v853 = vsel %vm843, nan, %v852
      %v854 = vmul.f32 %v424, %v544
      %v855 = vmul.f32 %v426, %v647
      %v856 = vmul.f32 %v428, %v750
      %v857 = vmul.f32 %v430, %v853
      %v858 = vand.u32 2147483647, %v434
      %vm859 = vcmp.le.f32.partialorder %v858, 0.7853982
      %vm860 = vcmp.lt.s32.totalorder %v434, 0
      %v861 = vand.u32 %v434, 2139095040
      %v862 = vshrl.u32 %v861, 23
      %v863 = vsub.s32 %v862, 127
      %v864 = vand.u32 2147483647, %v434
      %v865 = vand.u32 %v864, 8388607
      %v866 = vor.u32 %v865, 8388608
      %v867 = vsub.s32 0, %v866
      %v868 = vadd.s32 %v863, 1
      %vm869 = vcmp.gt.s32.totalorder %v868, 0
      %v870 = vsel %vm869, %v868, 0
      %v871 = vshrl.u32 %v870, 5
      %v872 = vand.u32 %v870, 31
      %v873 = vsub.s32 32, %v872
      %v874 = vshrl.u32 683565275, %v873
      %v875 = vshll.u32 683565275, %v872
      %v876 = vshrl.u32 2475754826, %v873
      %v877 = vor.u32 %v875, %v876
      %v878 = vshll.u32 2475754826, %v872
      %v879 = vshrl.u32 2131351028, %v873
      %v880 = vor.u32 %v878, %v879
      %v881 = vshll.u32 2131351028, %v872
      %v882 = vshrl.u32 2102212464, %v873
      %v883 = vor.u32 %v881, %v882
      %v884 = vshll.u32 2102212464, %v872
      %v885 = vshrl.u32 920167782, %v873
      %v886 = vor.u32 %v884, %v885
      %v887 = vshll.u32 920167782, %v872
      %v888 = vshrl.u32 1326507024, %v873
      %v889 = vor.u32 %v887, %v888
      %vm890 = vcmp.lt.s32.totalorder %v871, 1
      %vm891 = vcmp.lt.s32.totalorder %v871, 2
      %vm892 = vcmp.lt.s32.totalorder %v871, 3
      %vm893 = vcmp.lt.s32.totalorder %v871, 4
      %v894 = vsel %vm890, %v874, %v877
      %v895 = vsel %vm893, %v883, 2102212464
      %v896 = vsel %vm892, %v880, %v895
      %v897 = vsel %vm891, %v894, %v896
      %v898 = vsel %vm890, %v877, %v880
      %v899 = vsel %vm893, %v886, 920167782
      %v900 = vsel %vm892, %v883, %v899
      %v901 = vsel %vm891, %v898, %v900
      %v902 = vsel %vm890, %v880, %v883
      %v903 = vsel %vm893, %v889, 1326507024
      %v904 = vsel %vm892, %v886, %v903
      %v905 = vsel %vm891, %v902, %v904
      %v906 = vshll.u32 %v866, 8
      %v907 = vmul.u32.u64.compose %v906, %v905
      %v908 = vextract.low.u32 %v907
      %v909 = vextract.high.u32 %v907
      %v910 = vmul.u32.u64.compose %v906, %v901
      %v911 = vextract.low.u32 %v910
      %v912 = vextract.high.u32 %v910
      %v913 = vmul.u32 %v906, %v897
      %v914 = vadd.s32 %v909, %v911
      %vm915 = vc.u32 %v909, %v911
      %v916 = vadd.s32 %v912, 1
      %v917 = vsel %vm915, %v916, %v912
      %v918 = vadd.s32 %v913, %v917
      %v919 = vadd.s32 %v918, 536870912
      %v920 = vshrl.u32 %v919, 30
      %v921 = vshll.u32 %v920, 30
      %v922 = vsub.s32 %v918, %v921
      %vm923 = vcmp.lt.s32.totalorder %v922, 0
      %v924 = vsub.s32 0, %v922
      %v925 = vsel %vm923, %v924, %v922
      %v926 = vclz %v925
      %v927 = vsub.s32 %v926, 2
      %vm928 = vcmp.gt.s32.totalorder 0, %v927
      %v929 = vsel %vm928, 0, %v927
      %v930 = vsub.s32 32, %v929
      %v931 = vshll.u32 %v922, %v929
      %v932 = vshrl.u32 %v914, %v930
      %v933 = vor.u32 %v931, %v932
      %v934 = vsub.s32 4294967266, %v929
      %v935 = vadd.s32 %v934, 127
      %v936 = vshll.u32 %v935, 23
      %v937 = vor.u32 4788187, %v936
      %v938 = vand.u32 2147483647, %v937
      %v940 = vcvt.s32.f32 %v933
      %v941 = vmul.f32 %v940, %v938
      %v942 = vxor.u32 %v941, 2147483648
      %v943 = vsel %vm860, %v942, %v941
      %v944 = vsub.s32 4, %v920
      %v945 = vsel %vm860, %v944, %v920
      %v946 = vsel %vm859, %v434, %v943
      %v947 = vsel %vm859, 0, %v945
      %v948 = vcosq.f32.pop %v946
      %v949 = vsinq.f32.pop %v946
      %vm950 = vweird.f32 %v434
      %v951 = vadd.s32 %v947, 3
      %v952 = vand.u32 %v951, 3
      %vm953 = vcmp.lt.s32.totalorder %v952, 2
      %vm954 = vcmp.eq.s32.totalorder %v952, 0
      %v955 = vxor.u32 %v949, 2147483648
      %v956 = vsel %vm954, %v948, %v955
      %vm957 = vcmp.eq.s32.totalorder %v952, 2
      %v958 = vxor.u32 %v948, 2147483648
      %v959 = vsel %vm957, %v958, %v949
      %v960 = vsel %vm953, %v956, %v959
      %v961 = vsel %vm950, nan, %v960
      %v962 = vand.u32 2147483647, %v436
      %vm963 = vcmp.le.f32.partialorder %v962, 0.7853982
      %vm964 = vcmp.lt.s32.totalorder %v436, 0
      %v965 = vand.u32 %v436, 2139095040
      %v966 = vshrl.u32 %v965, 23
      %v967 = vsub.s32 %v966, 127
      %v968 = vand.u32 2147483647, %v436
      %v969 = vand.u32 %v968, 8388607
      %v970 = vor.u32 %v969, 8388608
      %v971 = vsub.s32 0, %v970
      %v972 = vadd.s32 %v967, 1
      %vm973 = vcmp.gt.s32.totalorder %v972, 0
      %v974 = vsel %vm973, %v972, 0
      %v975 = vshrl.u32 %v974, 5
      %v976 = vand.u32 %v974, 31
      %v977 = vsub.s32 32, %v976
      %v978 = vshrl.u32 683565275, %v977
      %v979 = vshll.u32 683565275, %v976
      %v980 = vshrl.u32 2475754826, %v977
      %v981 = vor.u32 %v979, %v980
      %v982 = vshll.u32 2475754826, %v976
      %v983 = vshrl.u32 2131351028, %v977
      %v984 = vor.u32 %v982, %v983
      %v985 = vshll.u32 2131351028, %v976
      %v986 = vshrl.u32 2102212464, %v977
      %v987 = vor.u32 %v985, %v986
      %v988 = vshll.u32 2102212464, %v976
      %v989 = vshrl.u32 920167782, %v977
      %v990 = vor.u32 %v988, %v989
      %v991 = vshll.u32 920167782, %v976
      %v992 = vshrl.u32 1326507024, %v977
      %v993 = vor.u32 %v991, %v992
      %vm994 = vcmp.lt.s32.totalorder %v975, 1
      %vm995 = vcmp.lt.s32.totalorder %v975, 2
      %vm996 = vcmp.lt.s32.totalorder %v975, 3
      %vm997 = vcmp.lt.s32.totalorder %v975, 4
      %v998 = vsel %vm994, %v978, %v981
      %v999 = vsel %vm997, %v987, 2102212464
      %v1000 = vsel %vm996, %v984, %v999
      %v1001 = vsel %vm995, %v998, %v1000
      %v1002 = vsel %vm994, %v981, %v984
      %v1003 = vsel %vm997, %v990, 920167782
      %v1004 = vsel %vm996, %v987, %v1003
      %v1005 = vsel %vm995, %v1002, %v1004
      %v1006 = vsel %vm994, %v984, %v987
      %v1007 = vsel %vm997, %v993, 1326507024
      %v1008 = vsel %vm996, %v990, %v1007
      %v1009 = vsel %vm995, %v1006, %v1008
      %v1010 = vshll.u32 %v970, 8
      %v1011 = vmul.u32.u64.compose %v1010, %v1009
      %v1012 = vextract.low.u32 %v1011
      %v1013 = vextract.high.u32 %v1011
      %v1014 = vmul.u32.u64.compose %v1010, %v1005
      %v1015 = vextract.low.u32 %v1014
      %v1016 = vextract.high.u32 %v1014
      %v1017 = vmul.u32 %v1010, %v1001
      %v1018 = vadd.s32 %v1013, %v1015
      %vm1019 = vc.u32 %v1013, %v1015
      %v1020 = vadd.s32 %v1016, 1
      %v1021 = vsel %vm1019, %v1020, %v1016
      %v1022 = vadd.s32 %v1017, %v1021
      %v1023 = vadd.s32 %v1022, 536870912
      %v1024 = vshrl.u32 %v1023, 30
      %v1025 = vshll.u32 %v1024, 30
      %v1026 = vsub.s32 %v1022, %v1025
      %vm1027 = vcmp.lt.s32.totalorder %v1026, 0
      %v1028 = vsub.s32 0, %v1026
      %v1029 = vsel %vm1027, %v1028, %v1026
      %v1030 = vclz %v1029
      %v1031 = vsub.s32 %v1030, 2
      %vm1032 = vcmp.gt.s32.totalorder 0, %v1031
      %v1033 = vsel %vm1032, 0, %v1031
      %v1034 = vsub.s32 32, %v1033
      %v1035 = vshll.u32 %v1026, %v1033
      %v1036 = vshrl.u32 %v1018, %v1034
      %v1037 = vor.u32 %v1035, %v1036
      %v1038 = vsub.s32 4294967266, %v1033
      %v1039 = vadd.s32 %v1038, 127
      %v1040 = vshll.u32 %v1039, 23
      %v1041 = vor.u32 4788187, %v1040
      %v1042 = vand.u32 2147483647, %v1041
      %v1044 = vcvt.s32.f32 %v1037
      %v1045 = vmul.f32 %v1044, %v1042
      %v1046 = vxor.u32 %v1045, 2147483648
      %v1047 = vsel %vm964, %v1046, %v1045
      %v1048 = vsub.s32 4, %v1024
      %v1049 = vsel %vm964, %v1048, %v1024
      %v1050 = vsel %vm963, %v436, %v1047
      %v1051 = vsel %vm963, 0, %v1049
      %v1052 = vcosq.f32.pop %v1050
      %v1053 = vsinq.f32.pop %v1050
      %vm1054 = vweird.f32 %v436
      %v1055 = vadd.s32 %v1051, 3
      %v1056 = vand.u32 %v1055, 3
      %vm1057 = vcmp.lt.s32.totalorder %v1056, 2
      %vm1058 = vcmp.eq.s32.totalorder %v1056, 0
      %v1059 = vxor.u32 %v1053, 2147483648
      %v1060 = vsel %vm1058, %v1052, %v1059
      %vm1061 = vcmp.eq.s32.totalorder %v1056, 2
      %v1062 = vxor.u32 %v1052, 2147483648
      %v1063 = vsel %vm1061, %v1062, %v1053
      %v1064 = vsel %vm1057, %v1060, %v1063
      %v1065 = vsel %vm1054, nan, %v1064
      %v1066 = vand.u32 2147483647, %v438
      %vm1067 = vcmp.le.f32.partialorder %v1066, 0.7853982
      %vm1068 = vcmp.lt.s32.totalorder %v438, 0
      %v1069 = vand.u32 %v438, 2139095040
      %v1070 = vshrl.u32 %v1069, 23
      %v1071 = vsub.s32 %v1070, 127
      %v1072 = vand.u32 2147483647, %v438
      %v1073 = vand.u32 %v1072, 8388607
      %v1074 = vor.u32 %v1073, 8388608
      %v1075 = vsub.s32 0, %v1074
      %v1076 = vadd.s32 %v1071, 1
      %vm1077 = vcmp.gt.s32.totalorder %v1076, 0
      %v1078 = vsel %vm1077, %v1076, 0
      %v1079 = vshrl.u32 %v1078, 5
      %v1080 = vand.u32 %v1078, 31
      %v1081 = vsub.s32 32, %v1080
      %v1082 = vshrl.u32 683565275, %v1081
      %v1083 = vshll.u32 683565275, %v1080
      %v1084 = vshrl.u32 2475754826, %v1081
      %v1085 = vor.u32 %v1083, %v1084
      %v1086 = vshll.u32 2475754826, %v1080
      %v1087 = vshrl.u32 2131351028, %v1081
      %v1088 = vor.u32 %v1086, %v1087
      %v1089 = vshll.u32 2131351028, %v1080
      %v1090 = vshrl.u32 2102212464, %v1081
      %v1091 = vor.u32 %v1089, %v1090
      %v1092 = vshll.u32 2102212464, %v1080
      %v1093 = vshrl.u32 920167782, %v1081
      %v1094 = vor.u32 %v1092, %v1093
      %v1095 = vshll.u32 920167782, %v1080
      %v1096 = vshrl.u32 1326507024, %v1081
      %v1097 = vor.u32 %v1095, %v1096
      %vm1098 = vcmp.lt.s32.totalorder %v1079, 1
      %vm1099 = vcmp.lt.s32.totalorder %v1079, 2
      %vm1100 = vcmp.lt.s32.totalorder %v1079, 3
      %vm1101 = vcmp.lt.s32.totalorder %v1079, 4
      %v1102 = vsel %vm1098, %v1082, %v1085
      %v1103 = vsel %vm1101, %v1091, 2102212464
      %v1104 = vsel %vm1100, %v1088, %v1103
      %v1105 = vsel %vm1099, %v1102, %v1104
      %v1106 = vsel %vm1098, %v1085, %v1088
      %v1107 = vsel %vm1101, %v1094, 920167782
      %v1108 = vsel %vm1100, %v1091, %v1107
      %v1109 = vsel %vm1099, %v1106, %v1108
      %v1110 = vsel %vm1098, %v1088, %v1091
      %v1111 = vsel %vm1101, %v1097, 1326507024
      %v1112 = vsel %vm1100, %v1094, %v1111
      %v1113 = vsel %vm1099, %v1110, %v1112
      %v1114 = vshll.u32 %v1074, 8
      %v1115 = vmul.u32.u64.compose %v1114, %v1113
      %v1116 = vextract.low.u32 %v1115
      %v1117 = vextract.high.u32 %v1115
      %v1118 = vmul.u32.u64.compose %v1114, %v1109
      %v1119 = vextract.low.u32 %v1118
      %v1120 = vextract.high.u32 %v1118
      %v1121 = vmul.u32 %v1114, %v1105
      %v1122 = vadd.s32 %v1117, %v1119
      %vm1123 = vc.u32 %v1117, %v1119
      %v1124 = vadd.s32 %v1120, 1
      %v1125 = vsel %vm1123, %v1124, %v1120
      %v1126 = vadd.s32 %v1121, %v1125
      %v1127 = vadd.s32 %v1126, 536870912
      %v1128 = vshrl.u32 %v1127, 30
      %v1129 = vshll.u32 %v1128, 30
      %v1130 = vsub.s32 %v1126, %v1129
      %vm1131 = vcmp.lt.s32.totalorder %v1130, 0
      %v1132 = vsub.s32 0, %v1130
      %v1133 = vsel %vm1131, %v1132, %v1130
      %v1134 = vclz %v1133
      %v1135 = vsub.s32 %v1134, 2
      %vm1136 = vcmp.gt.s32.totalorder 0, %v1135
      %v1137 = vsel %vm1136, 0, %v1135
      %v1138 = vsub.s32 32, %v1137
      %v1139 = vshll.u32 %v1130, %v1137
      %v1140 = vshrl.u32 %v1122, %v1138
      %v1141 = vor.u32 %v1139, %v1140
      %v1142 = vsub.s32 4294967266, %v1137
      %v1143 = vadd.s32 %v1142, 127
      %v1144 = vshll.u32 %v1143, 23
      %v1145 = vor.u32 4788187, %v1144
      %v1146 = vand.u32 2147483647, %v1145
      %v1148 = vcvt.s32.f32 %v1141
      %v1149 = vmul.f32 %v1148, %v1146
      %v1150 = vxor.u32 %v1149, 2147483648
      %v1151 = vsel %vm1068, %v1150, %v1149
      %v1152 = vsub.s32 4, %v1128
      %v1153 = vsel %vm1068, %v1152, %v1128
      %v1154 = vsel %vm1067, %v438, %v1151
      %v1155 = vsel %vm1067, 0, %v1153
      %v1156 = vcosq.f32.pop %v1154
      %v1157 = vsinq.f32.pop %v1154
      %vm1158 = vweird.f32 %v438
      %v1159 = vadd.s32 %v1155, 3
      %v1160 = vand.u32 %v1159, 3
      %vm1161 = vcmp.lt.s32.totalorder %v1160, 2
      %vm1162 = vcmp.eq.s32.totalorder %v1160, 0
      %v1163 = vxor.u32 %v1157, 2147483648
      %v1164 = vsel %vm1162, %v1156, %v1163
      %vm1165 = vcmp.eq.s32.totalorder %v1160, 2
      %v1166 = vxor.u32 %v1156, 2147483648
      %v1167 = vsel %vm1165, %v1166, %v1157
      %v1168 = vsel %vm1161, %v1164, %v1167
      %v1169 = vsel %vm1158, nan, %v1168
      %v1170 = vand.u32 2147483647, %v440
      %vm1171 = vcmp.le.f32.partialorder %v1170, 0.7853982
      %vm1172 = vcmp.lt.s32.totalorder %v440, 0
      %v1173 = vand.u32 %v440, 2139095040
      %v1174 = vshrl.u32 %v1173, 23
      %v1175 = vsub.s32 %v1174, 127
      %v1176 = vand.u32 2147483647, %v440
      %v1177 = vand.u32 %v1176, 8388607
      %v1178 = vor.u32 %v1177, 8388608
      %v1179 = vsub.s32 0, %v1178
      %v1180 = vadd.s32 %v1175, 1
      %vm1181 = vcmp.gt.s32.totalorder %v1180, 0
      %v1182 = vsel %vm1181, %v1180, 0
      %v1183 = vshrl.u32 %v1182, 5
      %v1184 = vand.u32 %v1182, 31
      %v1185 = vsub.s32 32, %v1184
      %v1186 = vshrl.u32 683565275, %v1185
      %v1187 = vshll.u32 683565275, %v1184
      %v1188 = vshrl.u32 2475754826, %v1185
      %v1189 = vor.u32 %v1187, %v1188
      %v1190 = vshll.u32 2475754826, %v1184
      %v1191 = vshrl.u32 2131351028, %v1185
      %v1192 = vor.u32 %v1190, %v1191
      %v1193 = vshll.u32 2131351028, %v1184
      %v1194 = vshrl.u32 2102212464, %v1185
      %v1195 = vor.u32 %v1193, %v1194
      %v1196 = vshll.u32 2102212464, %v1184
      %v1197 = vshrl.u32 920167782, %v1185
      %v1198 = vor.u32 %v1196, %v1197
      %v1199 = vshll.u32 920167782, %v1184
      %v1200 = vshrl.u32 1326507024, %v1185
      %v1201 = vor.u32 %v1199, %v1200
      %vm1202 = vcmp.lt.s32.totalorder %v1183, 1
      %vm1203 = vcmp.lt.s32.totalorder %v1183, 2
      %vm1204 = vcmp.lt.s32.totalorder %v1183, 3
      %vm1205 = vcmp.lt.s32.totalorder %v1183, 4
      %v1206 = vsel %vm1202, %v1186, %v1189
      %v1207 = vsel %vm1205, %v1195, 2102212464
      %v1208 = vsel %vm1204, %v1192, %v1207
      %v1209 = vsel %vm1203, %v1206, %v1208
      %v1210 = vsel %vm1202, %v1189, %v1192
      %v1211 = vsel %vm1205, %v1198, 920167782
      %v1212 = vsel %vm1204, %v1195, %v1211
      %v1213 = vsel %vm1203, %v1210, %v1212
      %v1214 = vsel %vm1202, %v1192, %v1195
      %v1215 = vsel %vm1205, %v1201, 1326507024
      %v1216 = vsel %vm1204, %v1198, %v1215
      %v1217 = vsel %vm1203, %v1214, %v1216
      %v1218 = vshll.u32 %v1178, 8
      %v1219 = vmul.u32.u64.compose %v1218, %v1217
      %v1220 = vextract.low.u32 %v1219
      %v1221 = vextract.high.u32 %v1219
      %v1222 = vmul.u32.u64.compose %v1218, %v1213
      %v1223 = vextract.low.u32 %v1222
      %v1224 = vextract.high.u32 %v1222
      %v1225 = vmul.u32 %v1218, %v1209
      %v1226 = vadd.s32 %v1221, %v1223
      %vm1227 = vc.u32 %v1221, %v1223
      %v1228 = vadd.s32 %v1224, 1
      %v1229 = vsel %vm1227, %v1228, %v1224
      %v1230 = vadd.s32 %v1225, %v1229
      %v1231 = vadd.s32 %v1230, 536870912
      %v1232 = vshrl.u32 %v1231, 30
      %v1233 = vshll.u32 %v1232, 30
      %v1234 = vsub.s32 %v1230, %v1233
      %vm1235 = vcmp.lt.s32.totalorder %v1234, 0
      %v1236 = vsub.s32 0, %v1234
      %v1237 = vsel %vm1235, %v1236, %v1234
      %v1238 = vclz %v1237
      %v1239 = vsub.s32 %v1238, 2
      %vm1240 = vcmp.gt.s32.totalorder 0, %v1239
      %v1241 = vsel %vm1240, 0, %v1239
      %v1242 = vsub.s32 32, %v1241
      %v1243 = vshll.u32 %v1234, %v1241
      %v1244 = vshrl.u32 %v1226, %v1242
      %v1245 = vor.u32 %v1243, %v1244
      %v1246 = vsub.s32 4294967266, %v1241
      %v1247 = vadd.s32 %v1246, 127
      %v1248 = vshll.u32 %v1247, 23
      %v1249 = vor.u32 4788187, %v1248
      %v1250 = vand.u32 2147483647, %v1249
      %v1252 = vcvt.s32.f32 %v1245
      %v1253 = vmul.f32 %v1252, %v1250
      %v1254 = vxor.u32 %v1253, 2147483648
      %v1255 = vsel %vm1172, %v1254, %v1253
      %v1256 = vsub.s32 4, %v1232
      %v1257 = vsel %vm1172, %v1256, %v1232
      %v1258 = vsel %vm1171, %v440, %v1255
      %v1259 = vsel %vm1171, 0, %v1257
      %v1260 = vcosq.f32.pop %v1258
      %v1261 = vsinq.f32.pop %v1258
      %vm1262 = vweird.f32 %v440
      %v1263 = vadd.s32 %v1259, 3
      %v1264 = vand.u32 %v1263, 3
      %vm1265 = vcmp.lt.s32.totalorder %v1264, 2
      %vm1266 = vcmp.eq.s32.totalorder %v1264, 0
      %v1267 = vxor.u32 %v1261, 2147483648
      %v1268 = vsel %vm1266, %v1260, %v1267
      %vm1269 = vcmp.eq.s32.totalorder %v1264, 2
      %v1270 = vxor.u32 %v1260, 2147483648
      %v1271 = vsel %vm1269, %v1270, %v1261
      %v1272 = vsel %vm1265, %v1268, %v1271
      %v1273 = vsel %vm1262, nan, %v1272
      %v1274 = vmul.f32 %v424, %v961
      %v1275 = vmul.f32 %v426, %v1065
      %v1276 = vmul.f32 %v428, %v1169
      %v1277 = vmul.f32 %v430, %v1273
      %v1278 = vld [vmem:[%s3] sm:$0xff]
      %v1279 = vld [vmem:[%s3 + $0x8] sm:$0xff]
      %v1280 = vld [vmem:[%s3 + $0x10] sm:$0xff]
      %v1281 = vld [vmem:[%s3 + $0x18] sm:$0xff]
      %v1282 = vld [vmem:[%s3 + $0x20] sm:$0xff]
      %v1283 = vld [vmem:[%s3 + $0x28] sm:$0xff]
      %v1284 = vld [vmem:[%s3 + $0x30] sm:$0xff]
      %v1285 = vld [vmem:[%s3 + $0x38] sm:$0xff]
      %v1286 = vld [vmem:[%s3 + $0x40] sm:$0xff]
      %v1287 = vld [vmem:[%s3 + $0x48] sm:$0xff]
      %v1288 = vld [vmem:[%s3 + $0x50] sm:$0xff]
      %v1289 = vld [vmem:[%s3 + $0x58] sm:$0xff]
      %v1290 = vld [vmem:[%s3 + $0x60] sm:$0xff]
      %v1291 = vld [vmem:[%s3 + $0x68] sm:$0xff]
      %v1292 = vld [vmem:[%s3 + $0x70] sm:$0xff]
      %v1293 = vld [vmem:[%s3 + $0x78] sm:$0xff]
      %v1294 = vld [vmem:[%s3 + $0x80] sm:$0xff]
      %v1295 = vld [vmem:[%s3 + $0x88] sm:$0xff]
      %v1296 = vld [vmem:[%s3 + $0x90] sm:$0xff]
      %v1297 = vld [vmem:[%s3 + $0x98] sm:$0xff]
      %v1298 = vld [vmem:[%s3 + $0xa0] sm:$0xff]
      %v1299 = vld [vmem:[%s3 + $0xa8] sm:$0xff]
      %v1300 = vld [vmem:[%s3 + $0xb0] sm:$0xff]
      %v1301 = vld [vmem:[%s3 + $0xb8] sm:$0xff]
      %v1302 = vld [vmem:[%s3 + $0xc0] sm:$0xff]
      %v1303 = vld [vmem:[%s3 + $0xc8] sm:$0xff]
      %v1304 = vld [vmem:[%s3 + $0xd0] sm:$0xff]
      %v1305 = vld [vmem:[%s3 + $0xd8] sm:$0xff]
      %v1306 = vld [vmem:[%s3 + $0xe0] sm:$0xff]
      %v1307 = vld [vmem:[%s3 + $0xe8] sm:$0xff]
      %v1308 = vld [vmem:[%s3 + $0xf0] sm:$0xff]
      %v1309 = vld [vmem:[%s3 + $0xf8] sm:$0xff]
      %v1310 = vld [vmem:[%s3 + $0x100] sm:$0xff]
      %v1311 = vld [vmem:[%s3 + $0x108] sm:$0xff]
      %v1312 = vld [vmem:[%s3 + $0x110] sm:$0xff]
      %v1313 = vld [vmem:[%s3 + $0x118] sm:$0xff]
      %v1314 = vld [vmem:[%s3 + $0x120] sm:$0xff]
      %v1315 = vld [vmem:[%s3 + $0x128] sm:$0xff]
      %v1316 = vld [vmem:[%s3 + $0x130] sm:$0xff]
      %v1317 = vld [vmem:[%s3 + $0x138] sm:$0xff]
      %v1318 = vld [vmem:[%s3 + $0x140] sm:$0xff]
      %v1319 = vld [vmem:[%s3 + $0x148] sm:$0xff]
      %v1320 = vld [vmem:[%s3 + $0x150] sm:$0xff]
      %v1321 = vld [vmem:[%s3 + $0x158] sm:$0xff]
      %v1322 = vld [vmem:[%s3 + $0x160] sm:$0xff]
      %v1323 = vld [vmem:[%s3 + $0x168] sm:$0xff]
      %v1324 = vld [vmem:[%s3 + $0x170] sm:$0xff]
      %v1325 = vld [vmem:[%s3 + $0x178] sm:$0xff]
      %v1326 = vld [vmem:[%s3 + $0x180] sm:$0xff]
      %v1327 = vld [vmem:[%s3 + $0x188] sm:$0xff]
      %v1328 = vld [vmem:[%s3 + $0x190] sm:$0xff]
      %v1329 = vld [vmem:[%s3 + $0x198] sm:$0xff]
      %v1330 = vld [vmem:[%s3 + $0x1a0] sm:$0xff]
      %v1331 = vld [vmem:[%s3 + $0x1a8] sm:$0xff]
      %v1332 = vld [vmem:[%s3 + $0x1b0] sm:$0xff]
      %v1333 = vld [vmem:[%s3 + $0x1b8] sm:$0xff]
      %v1334 = vld [vmem:[%s3 + $0x1c0] sm:$0xff]
      %v1335 = vld [vmem:[%s3 + $0x1c8] sm:$0xff]
      %v1336 = vld [vmem:[%s3 + $0x1d0] sm:$0xff]
      %v1337 = vld [vmem:[%s3 + $0x1d8] sm:$0xff]
      %v1338 = vld [vmem:[%s3 + $0x1e0] sm:$0xff]
      %v1339 = vld [vmem:[%s3 + $0x1e8] sm:$0xff]
      %v1340 = vld [vmem:[%s3 + $0x1f0] sm:$0xff]
      %v1341 = vld [vmem:[%s3 + $0x1f8] sm:$0xff]
      %v1342 = vld [vmem:[%s3 + $0x200] sm:$0xff]
      %v1343 = vld [vmem:[%s3 + $0x208] sm:$0xff]
      %v1344 = vld [vmem:[%s3 + $0x210] sm:$0xff]
      %v1345 = vld [vmem:[%s3 + $0x218] sm:$0xff]
      %v1346 = vld [vmem:[%s3 + $0x220] sm:$0xff]
      %v1347 = vld [vmem:[%s3 + $0x228] sm:$0xff]
      %v1348 = vld [vmem:[%s3 + $0x230] sm:$0xff]
      %v1349 = vld [vmem:[%s3 + $0x238] sm:$0xff]
      %v1350 = vld [vmem:[%s3 + $0x240] sm:$0xff]
      %v1351 = vld [vmem:[%s3 + $0x248] sm:$0xff]
      %v1352 = vld [vmem:[%s3 + $0x250] sm:$0xff]
      %v1353 = vld [vmem:[%s3 + $0x258] sm:$0xff]
      %v1354 = vld [vmem:[%s3 + $0x260] sm:$0xff]
      %v1355 = vld [vmem:[%s3 + $0x268] sm:$0xff]
      %v1356 = vld [vmem:[%s3 + $0x270] sm:$0xff]
      %v1357 = vld [vmem:[%s3 + $0x278] sm:$0xff]
      %v1358 = vld [vmem:[%s3 + $0x280] sm:$0xff]
      %v1359 = vld [vmem:[%s3 + $0x288] sm:$0xff]
      %v1360 = vld [vmem:[%s3 + $0x290] sm:$0xff]
      %v1361 = vld [vmem:[%s3 + $0x298] sm:$0xff]
      %v1362 = vld [vmem:[%s3 + $0x2a0] sm:$0xff]
      %v1363 = vld [vmem:[%s3 + $0x2a8] sm:$0xff]
      %v1364 = vld [vmem:[%s3 + $0x2b0] sm:$0xff]
      %v1365 = vld [vmem:[%s3 + $0x2b8] sm:$0xff]
      %v1366 = vld [vmem:[%s3 + $0x2c0] sm:$0xff]
      %v1367 = vld [vmem:[%s3 + $0x2c8] sm:$0xff]
      %v1368 = vld [vmem:[%s3 + $0x2d0] sm:$0xff]
      %v1369 = vld [vmem:[%s3 + $0x2d8] sm:$0xff]
      %v1370 = vld [vmem:[%s3 + $0x2e0] sm:$0xff]
      %v1371 = vld [vmem:[%s3 + $0x2e8] sm:$0xff]
      %v1372 = vld [vmem:[%s3 + $0x2f0] sm:$0xff]
      %v1373 = vld [vmem:[%s3 + $0x2f8] sm:$0xff]
      %v1374 = vld [vmem:[%s3 + $0x300] sm:$0xff]
      %v1375 = vld [vmem:[%s3 + $0x308] sm:$0xff]
      %v1376 = vld [vmem:[%s3 + $0x310] sm:$0xff]
      %v1377 = vld [vmem:[%s3 + $0x318] sm:$0xff]
      %v1378 = vld [vmem:[%s3 + $0x320] sm:$0xff]
      %v1379 = vld [vmem:[%s3 + $0x328] sm:$0xff]
      %v1380 = vld [vmem:[%s3 + $0x330] sm:$0xff]
      %v1381 = vld [vmem:[%s3 + $0x338] sm:$0xff]
      %v1382 = vld [vmem:[%s3 + $0x340] sm:$0xff]
      %v1383 = vld [vmem:[%s3 + $0x348] sm:$0xff]
      %v1384 = vld [vmem:[%s3 + $0x350] sm:$0xff]
      %v1385 = vld [vmem:[%s3 + $0x358] sm:$0xff]
      %v1386 = vld [vmem:[%s3 + $0x360] sm:$0xff]
      %v1387 = vld [vmem:[%s3 + $0x368] sm:$0xff]
      %v1388 = vld [vmem:[%s3 + $0x370] sm:$0xff]
      %v1389 = vld [vmem:[%s3 + $0x378] sm:$0xff]
      %v1390 = vld [vmem:[%s3 + $0x380] sm:$0xff]
      %v1391 = vld [vmem:[%s3 + $0x388] sm:$0xff]
      %v1392 = vld [vmem:[%s3 + $0x390] sm:$0xff]
      %v1393 = vld [vmem:[%s3 + $0x398] sm:$0xff]
      %v1394 = vld [vmem:[%s3 + $0x3a0] sm:$0xff]
      %v1395 = vld [vmem:[%s3 + $0x3a8] sm:$0xff]
      %v1396 = vld [vmem:[%s3 + $0x3b0] sm:$0xff]
      %v1397 = vld [vmem:[%s3 + $0x3b8] sm:$0xff]
      %v1398 = vld [vmem:[%s3 + $0x3c0] sm:$0xff]
      %v1399 = vld [vmem:[%s3 + $0x3c8] sm:$0xff]
      %v1400 = vld [vmem:[%s3 + $0x3d0] sm:$0xff]
      %v1401 = vld [vmem:[%s3 + $0x3d8] sm:$0xff]
      %v1402 = vld [vmem:[%s3 + $0x3e0] sm:$0xff]
      %v1403 = vld [vmem:[%s3 + $0x3e8] sm:$0xff]
      %v1404 = vld [vmem:[%s3 + $0x3f0] sm:$0xff]
      %v1405 = vld [vmem:[%s3 + $0x3f8] sm:$0xff]
      %1406 = vmatprep.subr.mxu0 %v1279
      %1407 = vmatpush1.msra.mxu0 %v1278
      %1408 = vmatprep.subr.mxu0 %v1281
      %1409 = vmatpush1.msra.mxu0 %v1280
      %1410 = vmatprep.subr.mxu0 %v1283
      %1411 = vmatpush1.msra.mxu0 %v1282
      %1412 = vmatprep.subr.mxu0 %v1285
      %1413 = vmatpush1.msra.mxu0 %v1284
      %1414 = vmatprep.subr.mxu0 %v1287
      %1415 = vmatpush1.msra.mxu0 %v1286
      %1416 = vmatprep.subr.mxu0 %v1289
      %1417 = vmatpush1.msra.mxu0 %v1288
      %1418 = vmatprep.subr.mxu0 %v1291
      %1419 = vmatpush1.msra.mxu0 %v1290
      %1420 = vmatprep.subr.mxu0 %v1293
      %1421 = vmatpush1.msra.mxu0 %v1292
      %1422 = vmatprep.subr.mxu0 %v1295
      %1423 = vmatpush1.msra.mxu0 %v1294
      %1424 = vmatprep.subr.mxu0 %v1297
      %1425 = vmatpush1.msra.mxu0 %v1296
      %1426 = vmatprep.subr.mxu0 %v1299
      %1427 = vmatpush1.msra.mxu0 %v1298
      %1428 = vmatprep.subr.mxu0 %v1301
      %1429 = vmatpush1.msra.mxu0 %v1300
      %1430 = vmatprep.subr.mxu0 %v1303
      %1431 = vmatpush1.msra.mxu0 %v1302
      %1432 = vmatprep.subr.mxu0 %v1305
      %1433 = vmatpush1.msra.mxu0 %v1304
      %1434 = vmatprep.subr.mxu0 %v1307
      %1435 = vmatpush1.msra.mxu0 %v1306
      %1436 = vmatprep.subr.mxu0 %v1309
      %1437 = vmatpush1.msra.mxu0 %v1308
      %1438 = vmatprep.subr.mxu0 %v1311
      %1439 = vmatpush1.msra.mxu0 %v1310
      %1440 = vmatprep.subr.mxu0 %v1313
      %1441 = vmatpush1.msra.mxu0 %v1312
      %1442 = vmatprep.subr.mxu0 %v1315
      %1443 = vmatpush1.msra.mxu0 %v1314
      %1444 = vmatprep.subr.mxu0 %v1317
      %1445 = vmatpush1.msra.mxu0 %v1316
      %1446 = vmatprep.subr.mxu0 %v1319
      %1447 = vmatpush1.msra.mxu0 %v1318
      %1448 = vmatprep.subr.mxu0 %v1321
      %1449 = vmatpush1.msra.mxu0 %v1320
      %1450 = vmatprep.subr.mxu0 %v1323
      %1451 = vmatpush1.msra.mxu0 %v1322
      %1452 = vmatprep.subr.mxu0 %v1325
      %1453 = vmatpush1.msra.mxu0 %v1324
      %1454 = vmatprep.subr.mxu0 %v1327
      %1455 = vmatpush1.msra.mxu0 %v1326
      %1456 = vmatprep.subr.mxu0 %v1329
      %1457 = vmatpush1.msra.mxu0 %v1328
      %1458 = vmatprep.subr.mxu0 %v1331
      %1459 = vmatpush1.msra.mxu0 %v1330
      %1460 = vmatprep.subr.mxu0 %v1333
      %1461 = vmatpush1.msra.mxu0 %v1332
      %1462 = vmatprep.subr.mxu0 %v1335
      %1463 = vmatpush1.msra.mxu0 %v1334
      %1464 = vmatprep.subr.mxu0 %v1337
      %1465 = vmatpush1.msra.mxu0 %v1336
      %1466 = vmatprep.subr.mxu0 %v1339
      %1467 = vmatpush1.msra.mxu0 %v1338
      %1468 = vmatprep.subr.mxu0 %v1341
      %1469 = vmatpush1.msra.mxu0 %v1340
      %1470 = vmatprep.mubr.f32.mxu0 %v855
      %1471 = vmatmul.mubr.f32.gmra.mrb[0].mxu0 %v854
      %v1472 = vpop.f32.mrb[0].mxu0
      %v1473 = vadd.f32 0.0, %v1472
      %v1474 = vpop.f32.mrb[0].mxu0
      %v1475 = vadd.f32 0.0, %v1474
      %1476 = vmatprep.mubr.f32.mxu0 %v857
      %1477 = vmatmul.mubr.f32.gmra.mrb[0].mxu0 %v856
      %v1478 = vpop.f32.mrb[0].mxu0
      %v1479 = vadd.f32 0.0, %v1478
      %v1480 = vpop.f32.mrb[0].mxu0
      %v1481 = vadd.f32 0.0, %v1480
      %1482 = vdwg.mxu0
      %1483 = vmatprep.subr.mxu0 %v1343
      %1484 = vmatpush1.msra.mxu0 %v1342
      %1485 = vmatprep.subr.mxu0 %v1345
      %1486 = vmatpush1.msra.mxu0 %v1344
      %1487 = vmatprep.subr.mxu0 %v1347
      %1488 = vmatpush1.msra.mxu0 %v1346
      %1489 = vmatprep.subr.mxu0 %v1349
      %1490 = vmatpush1.msra.mxu0 %v1348
      %1491 = vmatprep.subr.mxu0 %v1351
      %1492 = vmatpush1.msra.mxu0 %v1350
      %1493 = vmatprep.subr.mxu0 %v1353
      %1494 = vmatpush1.msra.mxu0 %v1352
      %1495 = vmatprep.subr.mxu0 %v1355
      %1496 = vmatpush1.msra.mxu0 %v1354
      %1497 = vmatprep.subr.mxu0 %v1357
      %1498 = vmatpush1.msra.mxu0 %v1356
      %1499 = vmatprep.subr.mxu0 %v1359
      %1500 = vmatpush1.msra.mxu0 %v1358
      %1501 = vmatprep.subr.mxu0 %v1361
      %1502 = vmatpush1.msra.mxu0 %v1360
      %1503 = vmatprep.subr.mxu0 %v1363
      %1504 = vmatpush1.msra.mxu0 %v1362
      %1505 = vmatprep.subr.mxu0 %v1365
      %1506 = vmatpush1.msra.mxu0 %v1364
      %1507 = vmatprep.subr.mxu0 %v1367
      %1508 = vmatpush1.msra.mxu0 %v1366
      %1509 = vmatprep.subr.mxu0 %v1369
      %1510 = vmatpush1.msra.mxu0 %v1368
      %1511 = vmatprep.subr.mxu0 %v1371
      %1512 = vmatpush1.msra.mxu0 %v1370
      %1513 = vmatprep.subr.mxu0 %v1373
      %1514 = vmatpush1.msra.mxu0 %v1372
      %1515 = vmatprep.subr.mxu0 %v1375
      %1516 = vmatpush1.msra.mxu0 %v1374
      %1517 = vmatprep.subr.mxu0 %v1377
      %1518 = vmatpush1.msra.mxu0 %v1376
      %1519 = vmatprep.subr.mxu0 %v1379
      %1520 = vmatpush1.msra.mxu0 %v1378
      %1521 = vmatprep.subr.mxu0 %v1381
      %1522 = vmatpush1.msra.mxu0 %v1380
      %1523 = vmatprep.subr.mxu0 %v1383
      %1524 = vmatpush1.msra.mxu0 %v1382
      %1525 = vmatprep.subr.mxu0 %v1385
      %1526 = vmatpush1.msra.mxu0 %v1384
      %1527 = vmatprep.subr.mxu0 %v1387
      %1528 = vmatpush1.msra.mxu0 %v1386
      %1529 = vmatprep.subr.mxu0 %v1389
      %1530 = vmatpush1.msra.mxu0 %v1388
      %1531 = vmatprep.subr.mxu0 %v1391
      %1532 = vmatpush1.msra.mxu0 %v1390
      %1533 = vmatprep.subr.mxu0 %v1393
      %1534 = vmatpush1.msra.mxu0 %v1392
      %1535 = vmatprep.subr.mxu0 %v1395
      %1536 = vmatpush1.msra.mxu0 %v1394
      %1537 = vmatprep.subr.mxu0 %v1397
      %1538 = vmatpush1.msra.mxu0 %v1396
      %1539 = vmatprep.subr.mxu0 %v1399
      %1540 = vmatpush1.msra.mxu0 %v1398
      %1541 = vmatprep.subr.mxu0 %v1401
      %1542 = vmatpush1.msra.mxu0 %v1400
      %1543 = vmatprep.subr.mxu0 %v1403
      %1544 = vmatpush1.msra.mxu0 %v1402
      %1545 = vmatprep.subr.mxu0 %v1405
      %1546 = vmatpush1.msra.mxu0 %v1404
      %1547 = vmatprep.mubr.f32.mxu0 %v1275
      %1548 = vmatmul.mubr.f32.gmra.mrb[0].mxu0 %v1274
      %v1549 = vpop.f32.mrb[0].mxu0
      %v1550 = vadd.f32 %v1473, %v1549
      %v1551 = vpop.f32.mrb[0].mxu0
      %v1552 = vadd.f32 %v1475, %v1551
      %1553 = vmatprep.mubr.f32.mxu0 %v1277
      %1554 = vmatmul.mubr.f32.gmra.mrb[0].mxu0 %v1276
      %v1555 = vpop.f32.mrb[0].mxu0
      %v1556 = vadd.f32 %v1479, %v1555
      %v1557 = vpop.f32.mrb[0].mxu0
      %v1558 = vadd.f32 %v1481, %v1557
      %1559 = vdwg.mxu0
      %v1560 = vand.u32 2147483647, %v1550
      %v1561 = vand.u32 2147483647, %v1552
      %v1562 = vand.u32 2147483647, %v1556
      %v1563 = vand.u32 2147483647, %v1558
      %v1564 = vadd.f32 %v1560, 1e-08
      %v1565 = vadd.f32 %v1561, 1e-08
      %v1566 = vadd.f32 %v1562, 1e-08
      %v1567 = vadd.f32 %v1563, 1e-08
      %1568 = vst [vmem:[%s197] sm:$0xff] %v1564
      %1569 = vst [vmem:[%s197 + $0x8] sm:$0xff] %v1565
      %1570 = vst [vmem:[%s197 + $0x10] sm:$0xff] %v1566
      %1571 = vst [vmem:[%s197 + $0x18] sm:$0xff] %v1567
      %p1572 = scmp.lt.s32.totalorder %s15, 1
      %s1573 = scalar_select %p1572, %s15, 1
      %s1574 = smul.addr %s1573, 4
      %s1575 = smul.addr %s1574, 8
      %s1576 = scalar_lea.vmem %s4, %s1575
      // Predicated region
      $region37: #{fpu_forward.1} parent=35 // pred_check
        %p1577 = pneg %p122
      $region38: #{fpu_forward.1} parent=35 // pred_check_branch
        %1579 = sbr.rel (%p1577) target = $region40
      $region39: #{fpu_forward.1} parent=35 // pred_region
        _
      $region40: #{fpu_forward.1} parent=35 // pred_fallthru
        _
    $region36: #{fpu_forward.1} parent=5 // pred_fallthru
      _
    %p1580 = scmp.le.s32.totalorder 2, %s10
    // Predicated region
    $region41: #{fpu_forward.1} parent=5 // pred_check
      %p1581 = pneg %p1580
    $region42: #{fpu_forward.1} parent=5 // pred_check_branch
      %1583 = sbr.rel (%p1581) target = $region44
    $region43: #{fpu_forward.1} parent=5 // pred_region
      %s1584 = ssub.s32 %s10, 2
      // Predicated region
      $region45: #{fpu_forward.1} parent=43 // pred_check
        %p1585 = pneg %p128
      $region46: #{fpu_forward.1} parent=43 // pred_check_branch
        %1587 = sbr.rel (%p1585) target = $region48
      $region47: #{fpu_forward.1} parent=43 // pred_region
        %p1588 = scmp.lt.s32.totalorder %s16, 1
        %s1589 = scalar_select %p1588, %s16, 1
        %s1590 = smul.addr %s1589, 4
        %s1591 = smul.addr %s1590, 8
        %s1592 = scalar_lea.vmem %s4, %s1591
      $region48: #{fpu_forward.1} parent=43 // pred_fallthru
        _
    $region44: #{fpu_forward.1} parent=5 // pred_fallthru
      _
  $region6: #{fpu_forward.1} parent=0 // loop_footer
    %s14 = sadd.s32 1, %s10
  $region7: #{fpu_forward.1} parent=0 // loop_footer_branch
    %9 = sbr.rel target = $region3
  $region8: #{fpu_forward.1} parent=0 // loop_exit
    _

</llo_original>
